<compile_context>
chip_gen: v6e
topology: v6e:2x2x1
jax: 0.10.0
libtpu: 0.0.40
codegen_flags: <defaults>
</compile_context>

<pallas_src>
import jax
import jax.numpy as jnp
from jax.experimental import pallas as pl
from jax.experimental.pallas import tpu as pltpu


# ----------------------------------------------------------------------------
# Small helpers
# ----------------------------------------------------------------------------
def _round_up(x, m):
    return ((x + m - 1) // m) * m


def _default_vmem_limit():
    """Scoped-VMEM limit: > the 16/32 MiB defaults, < every generation's
    physical VMEM (v7x: 64 MiB per TensorCore)."""
    limit = 48 << 20
    try:  # hardware-aware when the query is available
        cap = int(pltpu.get_tpu_info().vmem_capacity_bytes)
        limit = min(limit, (cap * 3) // 4)
    except Exception:
        pass
    return limit


def _per_row_bytes(weights, position_embedding, in_features, n_harm):
    """Rough live-VMEM bytes per row of a tile: double-buffered in/out blocks
    plus the widest pair of consecutive activations (or the stacked PE
    phase/sin/cos block)."""
    pad8 = lambda w: max(8, _round_up(int(w), 8))
    widths = [int(w.shape[0]) for w in weights] + [int(weights[-1].shape[1])]
    pair = max(pad8(a) + pad8(b) for a, b in zip(widths, widths[1:]))
    if position_embedding:
        emb_pad = in_features * pad8(n_harm)          # phase / sin / cos width
        pair = max(pair, 3 * emb_pad + pad8(widths[1]))
        in_w = in_features
    else:
        in_w = widths[0]
    io = 2 * (pad8(in_w) + pad8(widths[-1]))          # double-buffered in/out
    return 4 * (io + pair)


def _choose_row_tile(n_rows, per_row_bytes, resident_bytes, vmem_limit_bytes,
                     min_steps=8, max_tile=32768):
    """Lane-dense row tiles (multiples of 128).  Small N -> one grid step;
    large N -> >= min_steps steps (>= 4 per v7x TensorCore), tile capped by a
    VMEM budget derived from the scoped limit."""
    # Leave room for (double-buffered) resident weights + ~4 MiB headroom.
    budget = max(vmem_limit_bytes - 2 * resident_bytes - (4 << 20), 2 << 20)
    cap = min(max((budget // per_row_bytes) // 128 * 128, 128), max_tile)
    n128 = _round_up(n_rows, 128)
    if n128 <= min(cap, 4096):
        return n128                                   # single step: no per-step overhead
    tile = _round_up(-(-n_rows // min_steps), 128)    # >= min_steps grid steps
    tile = min(max(tile, 512), cap, n128)
    return max(tile, 128)


# ----------------------------------------------------------------------------
# Pallas kernel: full MLP pass on one lane-dense row tile [features, row_tile].
# ----------------------------------------------------------------------------
def _make_mlp_kernel(num_layers: int, outermost_linear: bool,
                     position_embedding: bool, in_features: int):
    def kernel(*refs):
        # refs = (x, [freqs_pad, wsin_pad, wcos_pad, b0 | w0, b0],
        #         w1, b1, ..., w_{L-1}, b_{L-1}, out)
        x_ref, out_ref = refs[0], refs[-1]
        h = x_ref[...].astype(jnp.float32)            # [in_features, rows]
        idx = 1

        if position_embedding:
            # Fused HarmonicEmbedding:
            #   phase built exactly on the VPU (f32) per input dim, stacked
            #   into a sublane-aligned block; sin/cos run once on the EUP; two
            #   wide MXU dots consume the pre-packed sin/cos weight halves.
            f_ref, ws_ref, wc_ref, b0_ref = refs[idx:idx + 4]
            idx += 4
            freqs = f_ref[...]                        # [nh_pad, 1] (zero-padded)
            phase = jnp.concatenate(
                [freqs * h[d:d + 1, :] for d in range(in_features)], axis=0)
            acc = jnp.dot(ws_ref[...], jnp.sin(phase),
                          preferred_element_type=jnp.float32)
            acc = acc + jnp.dot(wc_ref[...], jnp.cos(phase),
                                preferred_element_type=jnp.float32)
            h = jnp.maximum(acc + b0_ref[...], 0.0)   # first Linear + ReLU
            start = 1
        else:
            start = 0

        for l in range(start, num_layers):
            w_ref, b_ref = refs[idx], refs[idx + 1]
            idx += 2
            h = jnp.dot(w_ref[...], h,
                        preferred_element_type=jnp.float32) + b_ref[...]
            if (l < num_layers - 1) or (not outermost_linear):
                h = jnp.maximum(h, 0.0)               # nn.ReLU (lane-dense)
        out_ref[...] = h.astype(out_ref.dtype)

    return kernel


# ----------------------------------------------------------------------------
# Wrapper
# ----------------------------------------------------------------------------
def mlp_pallas(x2d, weights, biases, *, outermost_linear=False,
               position_embedding=False, n_harmonic_functions=60, omega0=0.5,
               row_tile=None, weight_dtype=None, vmem_limit_bytes=None,
               feature_major_out=False):
    """x2d: [N, in_features] raw coords; weights[l]: (in_l, out_l) (transposed
    vs. PyTorch); biases[l]: (out_l,).  With position_embedding=True,
    weights[0] has in_l = in_features*n_harm*2 and the harmonic embedding is
    computed inside the kernel (never materialized in HBM)."""
    N, in_features = x2d.shape
    num_layers = len(weights)
    out_features = int(weights[-1].shape[1])
    wdt = jnp.float32 if weight_dtype is None else weight_dtype

    # ---- resident (weight/bias) operands: constant index_map -> VMEM-resident
    resident = []
    w0_t = weights[0].T                                # [out0, in0] (PyTorch layout)
    b0 = biases[0].reshape(-1, 1).astype(jnp.float32)
    if position_embedding:
        nh = n_harmonic_functions
        nh_pad = _round_up(nh, 8)                      # sublane-aligned PE blocks
        out0 = w0_t.shape[0]
        freqs = omega0 * (2.0 ** jnp.arange(nh, dtype=jnp.float32))
        freqs_pad = jnp.pad(freqs, (0, nh_pad - nh)).reshape(nh_pad, 1)
        emb = in_features * nh
        # Pack sin/cos halves of the layer-0 weight, zero-padding each per-dim
        # block of nh columns to nh_pad (padded freq=0 -> sin term 0; cos term
        # is killed by the zero weight column).
        pad = ((0, 0), (0, 0), (0, nh_pad - nh))
        wsin = jnp.pad(w0_t[:, :emb].reshape(out0, in_features, nh), pad)
        wcos = jnp.pad(w0_t[:, emb:].reshape(out0, in_features, nh), pad)
        resident += [freqs_pad,
                     wsin.reshape(out0, in_features * nh_pad).astype(wdt),
                     wcos.reshape(out0, in_features * nh_pad).astype(wdt),
                     b0]
    else:
        nh = n_harmonic_functions
        resident += [w0_t.astype(wdt), b0]
    for w, b in zip(weights[1:], biases[1:]):
        resident += [w.T.astype(wdt), b.reshape(-1, 1).astype(jnp.float32)]

    # ---- tile policy (VMEM-budget aware, generation-safe) --------------------
    if vmem_limit_bytes is None:
        vmem_limit_bytes = _default_vmem_limit()
    if row_tile is None:
        prb = _per_row_bytes(weights, position_embedding, in_features, nh)
        rbytes = sum(int(a.size) * a.dtype.itemsize for a in resident)
        row_tile = _choose_row_tile(N, prb, rbytes, int(vmem_limit_bytes))
    row_tile = min(_round_up(int(row_tile), 128), _round_up(N, 128))
    n_pad = pl.cdiv(N, row_tile) * row_tile
    grid = (n_pad // row_tile,)

    # Lane-dense: rows on the last (128-lane) axis; transpose + pad fuse in XLA.
    x_t = x2d.T                                        # [in_features, N]
    if n_pad != N:
        x_t = jnp.pad(x_t, ((0, 0), (0, n_pad - N)))   # padded rows sliced off below

    in_specs = [pl.BlockSpec((in_features, row_tile), lambda i: (0, i))]
    in_specs += [pl.BlockSpec(a.shape, lambda i: (0, 0)) for a in resident]
    out_spec = pl.BlockSpec((out_features, row_tile), lambda i: (0, i))

    kernel = _make_mlp_kernel(num_layers, outermost_linear,
                              position_embedding, in_features)
    out_t = pl.pallas_call(
        kernel,
        grid=grid,
        in_specs=in_specs,
        out_specs=out_spec,
        out_shape=jax.ShapeDtypeStruct((out_features, n_pad), x2d.dtype),
        compiler_params=pltpu.CompilerParams(
            dimension_semantics=("parallel",),
            vmem_limit_bytes=int(vmem_limit_bytes)),
    )(x_t, *resident)

    out_t = out_t[:, :N]
    return out_t if feature_major_out else out_t.T     # module contract: [N, out]


# ----------------------------------------------------------------------------
# Glue: parameter init (kaiming_normal_ for relu, zero bias) + module wrapper
# ----------------------------------------------------------------------------
def init_relu_mlp_params(key, in_features, out_features, num_hidden_layers,
                         hidden_features):
    """Kaiming-normal (fan_in, gain=sqrt(2)) weights, zero biases.
    Weights stored as (in, out) (transposed vs. PyTorch)."""
    dims = ([in_features] + [hidden_features] * (num_hidden_layers + 1)
            + [out_features])
    weights, biases = [], []
    for l in range(len(dims) - 1):
        fan_in, fan_out = dims[l], dims[l + 1]
        key, sub = jax.random.split(key)
        std = (2.0 / fan_in) ** 0.5
        w = std * jax.random.normal(sub, (fan_in, fan_out), dtype=jnp.float32)
        weights.append(w)
        biases.append(jnp.zeros((fan_out,), dtype=jnp.float32))
    return weights, biases


def harmonic_embedding(x, n_harmonic_functions=60, omega0=0.5):
    """HarmonicEmbedding.forward in plain JAX (used only by the reference;
    the Pallas path computes it fused in-kernel)."""
    freqs = omega0 * 2.0 ** jnp.arange(n_harmonic_functions, dtype=x.dtype)
    embed = (x[..., None] * freqs).reshape(*x.shape[:-1], -1)
    return jnp.concatenate((jnp.sin(embed), jnp.cos(embed)), axis=-1)


def relu_mlp_forward(coords, weights, biases, *, outermost_linear=False,
                     position_embedding=False, n_harmonic_functions=60,
                     omega0=0.5, row_tile=None):
    """Equivalent of relu_MLP.forward: returns (output, coords)."""
    lead = coords.shape[:-1]
    x2d = coords.reshape(-1, coords.shape[-1])
    out2d = mlp_pallas(x2d, weights, biases,
                       outermost_linear=outermost_linear,
                       position_embedding=position_embedding,
                       n_harmonic_functions=n_harmonic_functions,
                       omega0=omega0, row_tile=row_tile)
    output = out2d.reshape(*lead, out2d.shape[-1])
    return output, coords


# Pure-JAX reference for verification.
def _reference(h, weights, biases, outermost_linear=False):
    L = len(weights)
    for l, (w, b) in enumerate(zip(weights, biases)):
        h = h @ w + b
        if (l < L - 1) or (not outermost_linear):
            h = jnp.maximum(h, 0.0)
    return h


if __name__ == "__main__":
    in_features = 3
    out_features = 4
    num_hidden_layers = 2
    hidden_features = 32
    outermost_linear = False

    key = jax.random.PRNGKey(0)
    kp, kx = jax.random.split(key)
    weights, biases = init_relu_mlp_params(
        kp, in_features, out_features, num_hidden_layers, hidden_features)

    # coords: [batch=2, points=512, in_features=3] -> N=1024 flattened rows.
    coords = jax.random.uniform(kx, (2, 512, in_features), dtype=jnp.float32,
                                minval=-1.0, maxval=1.0)
    ref = _reference(coords, weights, biases, outermost_linear)

    # --- path 1: position_embedding=False, auto tile (single grid step) -----
    output, coords_out = relu_mlp_forward(
        coords, weights, biases, outermost_linear=outermost_linear,
        position_embedding=False)
    output = jax.block_until_ready(output)
    assert output.shape == (2, 512, out_features)
    assert coords_out.shape == coords.shape
    assert jnp.allclose(output, ref, atol=1e-4, rtol=1e-4), \
        float(jnp.max(jnp.abs(output - ref)))

    # --- path 2: forced small tile -> exercises multi-step grid + row padding
    out_tiled, _ = relu_mlp_forward(
        coords, weights, biases, outermost_linear=outermost_linear,
        position_embedding=False, row_tile=384)
    out_tiled = jax.block_until_ready(out_tiled)
    assert jnp.allclose(out_tiled, ref, atol=1e-4, rtol=1e-4), \
        float(jnp.max(jnp.abs(out_tiled - ref)))

    # --- path 3: position_embedding=True with the fused harmonic embedding --
    n_harm = 6
    omega0 = 0.5
    kp2, _ = jax.random.split(kp)
    weights_pe, biases_pe = init_relu_mlp_params(
        kp2, in_features * n_harm * 2, out_features, num_hidden_layers,
        hidden_features)
    out_pe, _ = relu_mlp_forward(
        coords, weights_pe, biases_pe, outermost_linear=outermost_linear,
        position_embedding=True, n_harmonic_functions=n_harm, omega0=omega0)
    out_pe = jax.block_until_ready(out_pe)
    ref_pe = _reference(harmonic_embedding(coords, n_harm, omega0),
                        weights_pe, biases_pe, outermost_linear)
    assert out_pe.shape == (2, 512, out_features)
    assert jnp.allclose(out_pe, ref_pe, atol=5e-3, rtol=5e-3), \
        float(jnp.max(jnp.abs(out_pe - ref_pe)))

    print("KERNEL_OK")
</pallas_src>

<mosaic_0001>
module attributes {stable_mosaic.version = 11 : i64} {
  func.func @kernel(%arg0: i32, %arg1: memref<3x1024xf32, #tpu.memory_space<vmem>>, %arg2: memref<32x3xf32, #tpu.memory_space<vmem>>, %arg3: memref<32x1xf32, #tpu.memory_space<vmem>>, %arg4: memref<32x32xf32, #tpu.memory_space<vmem>>, %arg5: memref<32x1xf32, #tpu.memory_space<vmem>>, %arg6: memref<32x32xf32, #tpu.memory_space<vmem>>, %arg7: memref<32x1xf32, #tpu.memory_space<vmem>>, %arg8: memref<4x32xf32, #tpu.memory_space<vmem>>, %arg9: memref<4x1xf32, #tpu.memory_space<vmem>>, %arg10: memref<4x1024xf32, #tpu.memory_space<vmem>>) attributes {dimension_semantics = [#tpu.dimension_semantics<parallel>], iteration_bounds = array<i64: 1>, scalar_prefetch = 0 : i64, scratch_operands = 0 : i64, tpu.core_type = #tpu.core_type<tc>, window_params = [{transform_indices = @transform_0, window_bounds = array<i64: 3, 1024>}, {pipeline_mode = #tpu.pipeline_mode<synchronous>, transform_indices = @transform_1, window_bounds = array<i64: 32, 3>}, {pipeline_mode = #tpu.pipeline_mode<synchronous>, transform_indices = @transform_2, window_bounds = array<i64: 32, 1>}, {pipeline_mode = #tpu.pipeline_mode<synchronous>, transform_indices = @transform_3, window_bounds = array<i64: 32, 32>}, {pipeline_mode = #tpu.pipeline_mode<synchronous>, transform_indices = @transform_4, window_bounds = array<i64: 32, 1>}, {pipeline_mode = #tpu.pipeline_mode<synchronous>, transform_indices = @transform_5, window_bounds = array<i64: 32, 32>}, {pipeline_mode = #tpu.pipeline_mode<synchronous>, transform_indices = @transform_6, window_bounds = array<i64: 32, 1>}, {pipeline_mode = #tpu.pipeline_mode<synchronous>, transform_indices = @transform_7, window_bounds = array<i64: 4, 32>}, {pipeline_mode = #tpu.pipeline_mode<synchronous>, transform_indices = @transform_8, window_bounds = array<i64: 4, 1>}, {transform_indices = @transform_9, window_bounds = array<i64: 4, 1024>}]} {
    %c0 = arith.constant 0 : index
    %c0_0 = arith.constant 0 : index
    %0 = vector.load %arg1[%c0, %c0_0] : memref<3x1024xf32, #tpu.memory_space<vmem>>, vector<3x1024xf32>
    %c0_1 = arith.constant 0 : index
    %c0_2 = arith.constant 0 : index
    %1 = vector.load %arg2[%c0_1, %c0_2] : memref<32x3xf32, #tpu.memory_space<vmem>>, vector<32x3xf32>
    %cst = arith.constant dense<0.000000e+00> : vector<32x1024xf32>
    %2 = tpu.matmul %1, %0, %cst {dimension_numbers = #tpu.dot_dimension_numbers<[1], [0], [0], [1], [0, 0, 1, 1], [], []>} : vector<32x3xf32>, vector<3x1024xf32>, vector<32x1024xf32> -> vector<32x1024xf32>
    %c0_3 = arith.constant 0 : index
    %c0_4 = arith.constant 0 : index
    %3 = vector.load %arg3[%c0_3, %c0_4] : memref<32x1xf32, #tpu.memory_space<vmem>>, vector<32x1xf32>
    %4 = vector.broadcast %3 : vector<32x1xf32> to vector<32x1024xf32>
    %5 = arith.addf %2, %4 : vector<32x1024xf32>
    %cst_5 = arith.constant 0.000000e+00 : f32
    %6 = vector.broadcast %cst_5 : f32 to vector<32x1024xf32>
    %7 = arith.maximumf %5, %6 : vector<32x1024xf32>
    %c0_6 = arith.constant 0 : index
    %c0_7 = arith.constant 0 : index
    %8 = vector.load %arg4[%c0_6, %c0_7] : memref<32x32xf32, #tpu.memory_space<vmem>>, vector<32x32xf32>
    %cst_8 = arith.constant dense<0.000000e+00> : vector<32x1024xf32>
    %9 = tpu.matmul %8, %7, %cst_8 {dimension_numbers = #tpu.dot_dimension_numbers<[1], [0], [0], [1], [0, 0, 1, 1], [], []>} : vector<32x32xf32>, vector<32x1024xf32>, vector<32x1024xf32> -> vector<32x1024xf32>
    %c0_9 = arith.constant 0 : index
    %c0_10 = arith.constant 0 : index
    %10 = vector.load %arg5[%c0_9, %c0_10] : memref<32x1xf32, #tpu.memory_space<vmem>>, vector<32x1xf32>
    %11 = vector.broadcast %10 : vector<32x1xf32> to vector<32x1024xf32>
    %12 = arith.addf %9, %11 : vector<32x1024xf32>
    %cst_11 = arith.constant 0.000000e+00 : f32
    %13 = vector.broadcast %cst_11 : f32 to vector<32x1024xf32>
    %14 = arith.maximumf %12, %13 : vector<32x1024xf32>
    %c0_12 = arith.constant 0 : index
    %c0_13 = arith.constant 0 : index
    %15 = vector.load %arg6[%c0_12, %c0_13] : memref<32x32xf32, #tpu.memory_space<vmem>>, vector<32x32xf32>
    %cst_14 = arith.constant dense<0.000000e+00> : vector<32x1024xf32>
    %16 = tpu.matmul %15, %14, %cst_14 {dimension_numbers = #tpu.dot_dimension_numbers<[1], [0], [0], [1], [0, 0, 1, 1], [], []>} : vector<32x32xf32>, vector<32x1024xf32>, vector<32x1024xf32> -> vector<32x1024xf32>
    %c0_15 = arith.constant 0 : index
    %c0_16 = arith.constant 0 : index
    %17 = vector.load %arg7[%c0_15, %c0_16] : memref<32x1xf32, #tpu.memory_space<vmem>>, vector<32x1xf32>
    %18 = vector.broadcast %17 : vector<32x1xf32> to vector<32x1024xf32>
    %19 = arith.addf %16, %18 : vector<32x1024xf32>
    %cst_17 = arith.constant 0.000000e+00 : f32
    %20 = vector.broadcast %cst_17 : f32 to vector<32x1024xf32>
    %21 = arith.maximumf %19, %20 : vector<32x1024xf32>
    %c0_18 = arith.constant 0 : index
    %c0_19 = arith.constant 0 : index
    %22 = vector.load %arg8[%c0_18, %c0_19] : memref<4x32xf32, #tpu.memory_space<vmem>>, vector<4x32xf32>
    %cst_20 = arith.constant dense<0.000000e+00> : vector<4x1024xf32>
    %23 = tpu.matmul %22, %21, %cst_20 {dimension_numbers = #tpu.dot_dimension_numbers<[1], [0], [0], [1], [0, 0, 1, 1], [], []>} : vector<4x32xf32>, vector<32x1024xf32>, vector<4x1024xf32> -> vector<4x1024xf32>
    %c0_21 = arith.constant 0 : index
    %c0_22 = arith.constant 0 : index
    %24 = vector.load %arg9[%c0_21, %c0_22] : memref<4x1xf32, #tpu.memory_space<vmem>>, vector<4x1xf32>
    %25 = vector.broadcast %24 : vector<4x1xf32> to vector<4x1024xf32>
    %26 = arith.addf %23, %25 : vector<4x1024xf32>
    %cst_23 = arith.constant 0.000000e+00 : f32
    %27 = vector.broadcast %cst_23 : f32 to vector<4x1024xf32>
    %28 = arith.maximumf %26, %27 : vector<4x1024xf32>
    %c0_24 = arith.constant 0 : index
    %c0_25 = arith.constant 0 : index
    %29 = vector.load %arg10[%c0_24, %c0_25] : memref<4x1024xf32, #tpu.memory_space<vmem>>, vector<4x1024xf32>
    tpu.vector_store %arg10[%c0_24, %c0_25], %28 {strides = array<i32>} : memref<4x1024xf32, #tpu.memory_space<vmem>>, vector<4x1024xf32>,
    return
  }
  func.func @transform_0(%arg0: i32) -> (i32, i32) {
    %c0_i32 = arith.constant 0 : i32
    %c0_i32_0 = arith.constant 0 : i32
    return %c0_i32, %arg0 : i32, i32
  }
  func.func @transform_1(%arg0: i32) -> (i32, i32) {
    %c0_i32 = arith.constant 0 : i32
    %c0_i32_0 = arith.constant 0 : i32
    %c0_i32_1 = arith.constant 0 : i32
    return %c0_i32, %c0_i32_0 : i32, i32
  }
  func.func @transform_2(%arg0: i32) -> (i32, i32) {
    %c0_i32 = arith.constant 0 : i32
    %c0_i32_0 = arith.constant 0 : i32
    %c0_i32_1 = arith.constant 0 : i32
    return %c0_i32, %c0_i32_0 : i32, i32
  }
  func.func @transform_3(%arg0: i32) -> (i32, i32) {
    %c0_i32 = arith.constant 0 : i32
    %c0_i32_0 = arith.constant 0 : i32
    %c0_i32_1 = arith.constant 0 : i32
    return %c0_i32, %c0_i32_0 : i32, i32
  }
  func.func @transform_4(%arg0: i32) -> (i32, i32) {
    %c0_i32 = arith.constant 0 : i32
    %c0_i32_0 = arith.constant 0 : i32
    %c0_i32_1 = arith.constant 0 : i32
    return %c0_i32, %c0_i32_0 : i32, i32
  }
  func.func @transform_5(%arg0: i32) -> (i32, i32) {
    %c0_i32 = arith.constant 0 : i32
    %c0_i32_0 = arith.constant 0 : i32
    %c0_i32_1 = arith.constant 0 : i32
    return %c0_i32, %c0_i32_0 : i32, i32
  }
  func.func @transform_6(%arg0: i32) -> (i32, i32) {
    %c0_i32 = arith.constant 0 : i32
    %c0_i32_0 = arith.constant 0 : i32
    %c0_i32_1 = arith.constant 0 : i32
    return %c0_i32, %c0_i32_0 : i32, i32
  }
  func.func @transform_7(%arg0: i32) -> (i32, i32) {
    %c0_i32 = arith.constant 0 : i32
    %c0_i32_0 = arith.constant 0 : i32
    %c0_i32_1 = arith.constant 0 : i32
    return %c0_i32, %c0_i32_0 : i32, i32
  }
  func.func @transform_8(%arg0: i32) -> (i32, i32) {
    %c0_i32 = arith.constant 0 : i32
    %c0_i32_0 = arith.constant 0 : i32
    %c0_i32_1 = arith.constant 0 : i32
    return %c0_i32, %c0_i32_0 : i32, i32
  }
  func.func @transform_9(%arg0: i32) -> (i32, i32) {
    %c0_i32 = arith.constant 0 : i32
    %c0_i32_0 = arith.constant 0 : i32
    return %c0_i32, %arg0 : i32, i32
  }
}

</mosaic_0001>

<llo_original>
// kernel: tpu_custom_call.1
$region0: #{tpu_custom_call.1}
  #allocation0 [shape = 'u32[]', space=smem, size = 0x4, offset = 0x4, fixed_abs, tag = 'smem constant byte address 0x4 - core index']
  #allocation1 [shape = 'u32[144,128]{1,0:T(1,128)}', space=vmem, size = 0x12000, scoped, tag = 'internal scratch']
  %s0 = inlined_call_operand.vmem [shape: f32[3,1024], index: 0, kind: input, shape index: {}]
  %s1 = inlined_call_operand.vmem [shape: f32[32,3], index: 1, kind: input, shape index: {}]
  %s2 = inlined_call_operand.vmem [shape: f32[32,1], index: 2, kind: input, shape index: {}]
  %s3 = inlined_call_operand.vmem [shape: f32[32,32], index: 3, kind: input, shape index: {}]
  %s4 = inlined_call_operand.vmem [shape: f32[32,1], index: 4, kind: input, shape index: {}]
  %s5 = inlined_call_operand.vmem [shape: f32[32,32], index: 5, kind: input, shape index: {}]
  %s6 = inlined_call_operand.vmem [shape: f32[32,1], index: 6, kind: input, shape index: {}]
  %s7 = inlined_call_operand.vmem [shape: f32[4,32], index: 7, kind: input, shape index: {}]
  %s8 = inlined_call_operand.vmem [shape: f32[4,1], index: 8, kind: input, shape index: {}]
  %s9 = inlined_call_operand.hbm [shape: f32[4,1024], index: 9, kind: output, shape index: {}]
  %s10 = sld [smem:[#allocation0]]
  $region46: #{tpu_custom_call.1} parent=0
    _
  %s12 = ssub.s32 1, %s10
  %s13 = scalar_select 0, %s12, %s10
  $region1: #{tpu_custom_call.1} parent=0
    #allocation2 [shape = 'u8[16384]{0}', space=vmem, size = 0x4000, scoped, tag = 'output window, operand 0, single buffered']
    #allocation3 [shape = 's32[1]{0}', space=sflag, size = 0x4, scoped, tag = 'scoped memory for tpu_custom_call.1']
    %14 = vsyncpa [#allocation3], 0
    // Predicated region
    $region2: #{tpu_custom_call.1} parent=1 // pred_check
      _
    $region3: #{tpu_custom_call.1} parent=1 // pred_check_branch
      %16 = sbr.rel (0) target = $region5
    $region4: #{tpu_custom_call.1} parent=1 // pred_region
      _
    $region5: #{tpu_custom_call.1} parent=1 // pred_fallthru
      _
    // Predicated region
    $region6: #{tpu_custom_call.1} parent=1 // pred_check
      _
    $region7: #{tpu_custom_call.1} parent=1 // pred_check_branch
      %18 = sbr.rel (0) target = $region9
    $region8: #{tpu_custom_call.1} parent=1 // pred_region
      _
    $region9: #{tpu_custom_call.1} parent=1 // pred_fallthru
      _
    // Predicated region
    $region10: #{tpu_custom_call.1} parent=1 // pred_check
      _
    $region11: #{tpu_custom_call.1} parent=1 // pred_check_branch
      %20 = sbr.rel (0) target = $region13
    $region12: #{tpu_custom_call.1} parent=1 // pred_region
      _
    $region13: #{tpu_custom_call.1} parent=1 // pred_fallthru
      _
    // Predicated region
    $region14: #{tpu_custom_call.1} parent=1 // pred_check
      _
    $region15: #{tpu_custom_call.1} parent=1 // pred_check_branch
      %22 = sbr.rel (0) target = $region17
    $region16: #{tpu_custom_call.1} parent=1 // pred_region
      _
    $region17: #{tpu_custom_call.1} parent=1 // pred_fallthru
      _
    // Predicated region
    $region18: #{tpu_custom_call.1} parent=1 // pred_check
      _
    $region19: #{tpu_custom_call.1} parent=1 // pred_check_branch
      %24 = sbr.rel (0) target = $region21
    $region20: #{tpu_custom_call.1} parent=1 // pred_region
      _
    $region21: #{tpu_custom_call.1} parent=1 // pred_fallthru
      _
    // Predicated region
    $region22: #{tpu_custom_call.1} parent=1 // pred_check
      _
    $region23: #{tpu_custom_call.1} parent=1 // pred_check_branch
      %26 = sbr.rel (0) target = $region25
    $region24: #{tpu_custom_call.1} parent=1 // pred_region
      _
    $region25: #{tpu_custom_call.1} parent=1 // pred_fallthru
      _
    // Predicated region
    $region26: #{tpu_custom_call.1} parent=1 // pred_check
      _
    $region27: #{tpu_custom_call.1} parent=1 // pred_check_branch
      %28 = sbr.rel (0) target = $region29
    $region28: #{tpu_custom_call.1} parent=1 // pred_region
      _
    $region29: #{tpu_custom_call.1} parent=1 // pred_fallthru
      _
    // Predicated region
    $region30: #{tpu_custom_call.1} parent=1 // pred_check
      _
    $region31: #{tpu_custom_call.1} parent=1 // pred_check_branch
      %30 = sbr.rel (0) target = $region33
    $region32: #{tpu_custom_call.1} parent=1 // pred_region
      _
    $region33: #{tpu_custom_call.1} parent=1 // pred_fallthru
      _
    // Predicated region
    $region34: #{tpu_custom_call.1} parent=1 // pred_check
      _
    $region35: #{tpu_custom_call.1} parent=1 // pred_check_branch
      %32 = sbr.rel (0) target = $region37
    $region36: #{tpu_custom_call.1} parent=1 // pred_region
      _
    $region37: #{tpu_custom_call.1} parent=1 // pred_fallthru
      _
    %v33 = vld [vmem:[%s0] sm:$0x77]
    %v34 = vld [vmem:[%s0 + $0x8] sm:$0x77]
    %v35 = vld [vmem:[%s0 + $0x10] sm:$0x77]
    %v36 = vld [vmem:[%s0 + $0x18] sm:$0x77]
    %v37 = vld [vmem:[%s1] sm:$0xff]
    %v38 = vld [vmem:[%s1 + $0x8] sm:$0xff]
    %v39 = vld [vmem:[%s1 + $0x10] sm:$0xff]
    %v40 = vld [vmem:[%s1 + $0x18] sm:$0xff]
    %v41 = vld [vmem:[%s2] sm:$0xff]
    %v42 = vld [vmem:[%s2 + $0x8] sm:$0xff]
    %v43 = vld [vmem:[%s2 + $0x10] sm:$0xff]
    %v44 = vld [vmem:[%s2 + $0x18] sm:$0xff]
    %46 = vset.pattern.permute.xlu0 0
    %47 = vperm.xlu0 %46, %v41
    %v48 = vpop.permute.xlu0 %47
    %51 = vset.pattern.permute.xlu0 0
    %52 = vperm.xlu0 %51, %v42
    %v53 = vpop.permute.xlu0 %52
    %56 = vset.pattern.permute.xlu0 0
    %57 = vperm.xlu0 %56, %v43
    %v58 = vpop.permute.xlu0 %57
    %61 = vset.pattern.permute.xlu0 0
    %62 = vperm.xlu0 %61, %v44
    %v63 = vpop.permute.xlu0 %62
    %v69 = vcombine.high %v33, %v33
    %v70 = vcombine.high %v34, %v34
    %v71 = vcombine.high %v35, %v35
    %v72 = vcombine.high %v36, %v36
    %vm73 = vcmask 23552
    %v75 = vsel %vm73, %v37, 0
    %v78 = vsel %vm73, %v38, 0
    %v81 = vsel %vm73, %v39, 0
    %v84 = vsel %vm73, %v40, 0
    %vm86 = vcmask 1042432
    %v87 = vsel %vm86, %v33, 0
    %v89 = vsel %vm86, %v69, 0
    %v91 = vsel %vm86, %v34, 0
    %v93 = vsel %vm86, %v70, 0
    %v95 = vsel %vm86, %v35, 0
    %v97 = vsel %vm86, %v71, 0
    %v99 = vsel %vm86, %v36, 0
    %v101 = vsel %vm86, %v72, 0
    %103 = vmatprep.subr.mxu0 0.0
    %104 = vmatpush1.msra.mxu0 0.0
    %105 = vmatprep.subr.mxu0 0.0
    %106 = vmatpush1.msra.mxu0 0.0
    %107 = vmatprep.subr.mxu0 0.0
    %108 = vmatpush1.msra.mxu0 0.0
    %109 = vmatprep.subr.mxu0 0.0
    %110 = vmatpush1.msra.mxu0 0.0
    %111 = vmatprep.subr.mxu0 0.0
    %112 = vmatpush1.msra.mxu0 0.0
    %113 = vmatprep.subr.mxu0 0.0
    %114 = vmatpush1.msra.mxu0 0.0
    %115 = vmatprep.subr.mxu0 0.0
    %116 = vmatpush1.msra.mxu0 0.0
    %117 = vmatprep.subr.mxu0 0.0
    %118 = vmatpush1.msra.mxu0 0.0
    %119 = vmatprep.subr.mxu0 0.0
    %120 = vmatpush1.msra.mxu0 0.0
    %121 = vmatprep.subr.mxu0 0.0
    %122 = vmatpush1.msra.mxu0 0.0
    %123 = vmatprep.subr.mxu0 0.0
    %124 = vmatpush1.msra.mxu0 0.0
    %125 = vmatprep.subr.mxu0 0.0
    %126 = vmatpush1.msra.mxu0 0.0
    %127 = vmatprep.subr.mxu0 0.0
    %128 = vmatpush1.msra.mxu0 0.0
    %129 = vmatprep.subr.mxu0 0.0
    %130 = vmatpush1.msra.mxu0 0.0
    %131 = vmatprep.subr.mxu0 0.0
    %132 = vmatpush1.msra.mxu0 0.0
    %133 = vmatprep.subr.mxu0 %v89
    %134 = vmatpush1.msra.mxu0 %v87
    %135 = vmatprep.subr.mxu0 0.0
    %136 = vmatpush2.msra.mxu0 0.0
    %137 = vmatprep.subr.mxu0 0.0
    %138 = vmatpush2.msra.mxu0 0.0
    %139 = vmatprep.subr.mxu0 0.0
    %140 = vmatpush2.msra.mxu0 0.0
    %141 = vmatprep.subr.mxu0 0.0
    %142 = vmatpush2.msra.mxu0 0.0
    %143 = vmatprep.subr.mxu0 0.0
    %144 = vmatpush2.msra.mxu0 0.0
    %145 = vmatprep.subr.mxu0 0.0
    %146 = vmatpush2.msra.mxu0 0.0
    %147 = vmatprep.subr.mxu0 0.0
    %148 = vmatpush2.msra.mxu0 0.0
    %149 = vmatprep.subr.mxu0 0.0
    %150 = vmatpush2.msra.mxu0 0.0
    %151 = vmatprep.subr.mxu0 0.0
    %152 = vmatpush2.msra.mxu0 0.0
    %153 = vmatprep.subr.mxu0 0.0
    %154 = vmatpush2.msra.mxu0 0.0
    %155 = vmatprep.subr.mxu0 0.0
    %156 = vmatpush2.msra.mxu0 0.0
    %157 = vmatprep.subr.mxu0 0.0
    %158 = vmatpush2.msra.mxu0 0.0
    %159 = vmatprep.subr.mxu0 0.0
    %160 = vmatpush2.msra.mxu0 0.0
    %161 = vmatprep.subr.mxu0 0.0
    %162 = vmatpush2.msra.mxu0 0.0
    %163 = vmatprep.subr.mxu0 0.0
    %164 = vmatpush2.msra.mxu0 0.0
    %165 = vmatprep.subr.mxu0 0.0
    %166 = vmatpush2.msra.mxu0 0.0
    %167 = vmatprep.mubr.f32.mxu0 0.0
    %168 = vmatmul.mubr.f32.gmra.mxu0 %v75
    %v169 = vpop.f32.mrf.mxu0
    %v170 = vadd.f32 %v48, %v169
    %v171 = vpop.f32.mrf.mxu0
    %v172 = vadd.f32 %v48, %v171
    %173 = vmatprep.mubr.f32.mxu0 0.0
    %174 = vmatmul.mubr.f32.gmra.mxu0 %v78
    %v175 = vpop.f32.mrf.mxu0
    %v176 = vadd.f32 %v53, %v175
    %v177 = vpop.f32.mrf.mxu0
    %v178 = vadd.f32 %v53, %v177
    %179 = vmatprep.mubr.f32.mxu0 0.0
    %180 = vmatmul.mubr.f32.gmra.mxu0 %v81
    %v181 = vpop.f32.mrf.mxu0
    %v182 = vadd.f32 %v58, %v181
    %v183 = vpop.f32.mrf.mxu0
    %v184 = vadd.f32 %v58, %v183
    %185 = vmatprep.mubr.f32.mxu0 0.0
    %186 = vmatmul.mubr.f32.gmra.mxu0 %v84
    %v187 = vpop.f32.mrf.mxu0
    %v188 = vadd.f32 %v63, %v187
    %v189 = vpop.f32.mrf.mxu0
    %v190 = vadd.f32 %v63, %v189
    %191 = vdwg.mxu0
    %192 = vmatprep.subr.mxu0 0.0
    %193 = vmatpush1.msra.mxu0 0.0
    %194 = vmatprep.subr.mxu0 0.0
    %195 = vmatpush1.msra.mxu0 0.0
    %196 = vmatprep.subr.mxu0 0.0
    %197 = vmatpush1.msra.mxu0 0.0
    %198 = vmatprep.subr.mxu0 0.0
    %199 = vmatpush1.msra.mxu0 0.0
    %200 = vmatprep.subr.mxu0 0.0
    %201 = vmatpush1.msra.mxu0 0.0
    %202 = vmatprep.subr.mxu0 0.0
    %203 = vmatpush1.msra.mxu0 0.0
    %204 = vmatprep.subr.mxu0 0.0
    %205 = vmatpush1.msra.mxu0 0.0
    %206 = vmatprep.subr.mxu0 0.0
    %207 = vmatpush1.msra.mxu0 0.0
    %208 = vmatprep.subr.mxu0 0.0
    %209 = vmatpush1.msra.mxu0 0.0
    %210 = vmatprep.subr.mxu0 0.0
    %211 = vmatpush1.msra.mxu0 0.0
    %212 = vmatprep.subr.mxu0 0.0
    %213 = vmatpush1.msra.mxu0 0.0
    %214 = vmatprep.subr.mxu0 0.0
    %215 = vmatpush1.msra.mxu0 0.0
    %216 = vmatprep.subr.mxu0 0.0
    %217 = vmatpush1.msra.mxu0 0.0
    %218 = vmatprep.subr.mxu0 0.0
    %219 = vmatpush1.msra.mxu0 0.0
    %220 = vmatprep.subr.mxu0 0.0
    %221 = vmatpush1.msra.mxu0 0.0
    %222 = vmatprep.subr.mxu0 %v93
    %223 = vmatpush1.msra.mxu0 %v91
    %224 = vmatprep.subr.mxu0 0.0
    %225 = vmatpush2.msra.mxu0 0.0
    %226 = vmatprep.subr.mxu0 0.0
    %227 = vmatpush2.msra.mxu0 0.0
    %228 = vmatprep.subr.mxu0 0.0
    %229 = vmatpush2.msra.mxu0 0.0
    %230 = vmatprep.subr.mxu0 0.0
    %231 = vmatpush2.msra.mxu0 0.0
    %232 = vmatprep.subr.mxu0 0.0
    %233 = vmatpush2.msra.mxu0 0.0
    %234 = vmatprep.subr.mxu0 0.0
    %235 = vmatpush2.msra.mxu0 0.0
    %236 = vmatprep.subr.mxu0 0.0
    %237 = vmatpush2.msra.mxu0 0.0
    %238 = vmatprep.subr.mxu0 0.0
    %239 = vmatpush2.msra.mxu0 0.0
    %240 = vmatprep.subr.mxu0 0.0
    %241 = vmatpush2.msra.mxu0 0.0
    %242 = vmatprep.subr.mxu0 0.0
    %243 = vmatpush2.msra.mxu0 0.0
    %244 = vmatprep.subr.mxu0 0.0
    %245 = vmatpush2.msra.mxu0 0.0
    %246 = vmatprep.subr.mxu0 0.0
    %247 = vmatpush2.msra.mxu0 0.0
    %248 = vmatprep.subr.mxu0 0.0
    %249 = vmatpush2.msra.mxu0 0.0
    %250 = vmatprep.subr.mxu0 0.0
    %251 = vmatpush2.msra.mxu0 0.0
    %252 = vmatprep.subr.mxu0 0.0
    %253 = vmatpush2.msra.mxu0 0.0
    %254 = vmatprep.subr.mxu0 0.0
    %255 = vmatpush2.msra.mxu0 0.0
    %256 = vmatprep.mubr.f32.mxu0 0.0
    %257 = vmatmul.mubr.f32.gmra.mxu0 %v75
    %v258 = vpop.f32.mrf.mxu0
    %v259 = vadd.f32 %v48, %v258
    %v260 = vpop.f32.mrf.mxu0
    %v261 = vadd.f32 %v48, %v260
    %262 = vmatprep.mubr.f32.mxu0 0.0
    %263 = vmatmul.mubr.f32.gmra.mxu0 %v78
    %v264 = vpop.f32.mrf.mxu0
    %v265 = vadd.f32 %v53, %v264
    %v266 = vpop.f32.mrf.mxu0
    %v267 = vadd.f32 %v53, %v266
    %268 = vmatprep.mubr.f32.mxu0 0.0
    %269 = vmatmul.mubr.f32.gmra.mxu0 %v81
    %v270 = vpop.f32.mrf.mxu0
    %v271 = vadd.f32 %v58, %v270
    %v272 = vpop.f32.mrf.mxu0
    %v273 = vadd.f32 %v58, %v272
    %274 = vmatprep.mubr.f32.mxu0 0.0
    %275 = vmatmul.mubr.f32.gmra.mxu0 %v84
    %v276 = vpop.f32.mrf.mxu0
    %v277 = vadd.f32 %v63, %v276
    %v278 = vpop.f32.mrf.mxu0
    %v279 = vadd.f32 %v63, %v278
    %280 = vdwg.mxu0
    %281 = vmatprep.subr.mxu0 0.0
    %282 = vmatpush1.msra.mxu0 0.0
    %283 = vmatprep.subr.mxu0 0.0
    %284 = vmatpush1.msra.mxu0 0.0
    %285 = vmatprep.subr.mxu0 0.0
    %286 = vmatpush1.msra.mxu0 0.0
    %287 = vmatprep.subr.mxu0 0.0
    %288 = vmatpush1.msra.mxu0 0.0
    %289 = vmatprep.subr.mxu0 0.0
    %290 = vmatpush1.msra.mxu0 0.0
    %291 = vmatprep.subr.mxu0 0.0
    %292 = vmatpush1.msra.mxu0 0.0
    %293 = vmatprep.subr.mxu0 0.0
    %294 = vmatpush1.msra.mxu0 0.0
    %295 = vmatprep.subr.mxu0 0.0
    %296 = vmatpush1.msra.mxu0 0.0
    %297 = vmatprep.subr.mxu0 0.0
    %298 = vmatpush1.msra.mxu0 0.0
    %299 = vmatprep.subr.mxu0 0.0
    %300 = vmatpush1.msra.mxu0 0.0
    %301 = vmatprep.subr.mxu0 0.0
    %302 = vmatpush1.msra.mxu0 0.0
    %303 = vmatprep.subr.mxu0 0.0
    %304 = vmatpush1.msra.mxu0 0.0
    %305 = vmatprep.subr.mxu0 0.0
    %306 = vmatpush1.msra.mxu0 0.0
    %307 = vmatprep.subr.mxu0 0.0
    %308 = vmatpush1.msra.mxu0 0.0
    %309 = vmatprep.subr.mxu0 0.0
    %310 = vmatpush1.msra.mxu0 0.0
    %311 = vmatprep.subr.mxu0 %v97
    %312 = vmatpush1.msra.mxu0 %v95
    %313 = vmatprep.subr.mxu0 0.0
    %314 = vmatpush2.msra.mxu0 0.0
    %315 = vmatprep.subr.mxu0 0.0
    %316 = vmatpush2.msra.mxu0 0.0
    %317 = vmatprep.subr.mxu0 0.0
    %318 = vmatpush2.msra.mxu0 0.0
    %319 = vmatprep.subr.mxu0 0.0
    %320 = vmatpush2.msra.mxu0 0.0
    %321 = vmatprep.subr.mxu0 0.0
    %322 = vmatpush2.msra.mxu0 0.0
    %323 = vmatprep.subr.mxu0 0.0
    %324 = vmatpush2.msra.mxu0 0.0
    %325 = vmatprep.subr.mxu0 0.0
    %326 = vmatpush2.msra.mxu0 0.0
    %327 = vmatprep.subr.mxu0 0.0
    %328 = vmatpush2.msra.mxu0 0.0
    %329 = vmatprep.subr.mxu0 0.0
    %330 = vmatpush2.msra.mxu0 0.0
    %331 = vmatprep.subr.mxu0 0.0
    %332 = vmatpush2.msra.mxu0 0.0
    %333 = vmatprep.subr.mxu0 0.0
    %334 = vmatpush2.msra.mxu0 0.0
    %335 = vmatprep.subr.mxu0 0.0
    %336 = vmatpush2.msra.mxu0 0.0
    %337 = vmatprep.subr.mxu0 0.0
    %338 = vmatpush2.msra.mxu0 0.0
    %339 = vmatprep.subr.mxu0 0.0
    %340 = vmatpush2.msra.mxu0 0.0
    %341 = vmatprep.subr.mxu0 0.0
    %342 = vmatpush2.msra.mxu0 0.0
    %343 = vmatprep.subr.mxu0 0.0
    %344 = vmatpush2.msra.mxu0 0.0
    %345 = vmatprep.mubr.f32.mxu0 0.0
    %346 = vmatmul.mubr.f32.gmra.mxu0 %v75
    %v347 = vpop.f32.mrf.mxu0
    %v348 = vadd.f32 %v48, %v347
    %v349 = vpop.f32.mrf.mxu0
    %v350 = vadd.f32 %v48, %v349
    %351 = vmatprep.mubr.f32.mxu0 0.0
    %352 = vmatmul.mubr.f32.gmra.mxu0 %v78
    %v353 = vpop.f32.mrf.mxu0
    %v354 = vadd.f32 %v53, %v353
    %v355 = vpop.f32.mrf.mxu0
    %v356 = vadd.f32 %v53, %v355
    %357 = vmatprep.mubr.f32.mxu0 0.0
    %358 = vmatmul.mubr.f32.gmra.mxu0 %v81
    %v359 = vpop.f32.mrf.mxu0
    %v360 = vadd.f32 %v58, %v359
    %v361 = vpop.f32.mrf.mxu0
    %v362 = vadd.f32 %v58, %v361
    %363 = vmatprep.mubr.f32.mxu0 0.0
    %364 = vmatmul.mubr.f32.gmra.mxu0 %v84
    %v365 = vpop.f32.mrf.mxu0
    %v366 = vadd.f32 %v63, %v365
    %v367 = vpop.f32.mrf.mxu0
    %v368 = vadd.f32 %v63, %v367
    %369 = vdwg.mxu0
    %370 = vmatprep.subr.mxu0 0.0
    %371 = vmatpush1.msra.mxu0 0.0
    %372 = vmatprep.subr.mxu0 0.0
    %373 = vmatpush1.msra.mxu0 0.0
    %374 = vmatprep.subr.mxu0 0.0
    %375 = vmatpush1.msra.mxu0 0.0
    %376 = vmatprep.subr.mxu0 0.0
    %377 = vmatpush1.msra.mxu0 0.0
    %378 = vmatprep.subr.mxu0 0.0
    %379 = vmatpush1.msra.mxu0 0.0
    %380 = vmatprep.subr.mxu0 0.0
    %381 = vmatpush1.msra.mxu0 0.0
    %382 = vmatprep.subr.mxu0 0.0
    %383 = vmatpush1.msra.mxu0 0.0
    %384 = vmatprep.subr.mxu0 0.0
    %385 = vmatpush1.msra.mxu0 0.0
    %386 = vmatprep.subr.mxu0 0.0
    %387 = vmatpush1.msra.mxu0 0.0
    %388 = vmatprep.subr.mxu0 0.0
    %389 = vmatpush1.msra.mxu0 0.0
    %390 = vmatprep.subr.mxu0 0.0
    %391 = vmatpush1.msra.mxu0 0.0
    %392 = vmatprep.subr.mxu0 0.0
    %393 = vmatpush1.msra.mxu0 0.0
    %394 = vmatprep.subr.mxu0 0.0
    %395 = vmatpush1.msra.mxu0 0.0
    %396 = vmatprep.subr.mxu0 0.0
    %397 = vmatpush1.msra.mxu0 0.0
    %398 = vmatprep.subr.mxu0 0.0
    %399 = vmatpush1.msra.mxu0 0.0
    %400 = vmatprep.subr.mxu0 %v101
    %401 = vmatpush1.msra.mxu0 %v99
    %402 = vmatprep.subr.mxu0 0.0
    %403 = vmatpush2.msra.mxu0 0.0
    %404 = vmatprep.subr.mxu0 0.0
    %405 = vmatpush2.msra.mxu0 0.0
    %406 = vmatprep.subr.mxu0 0.0
    %407 = vmatpush2.msra.mxu0 0.0
    %408 = vmatprep.subr.mxu0 0.0
    %409 = vmatpush2.msra.mxu0 0.0
    %410 = vmatprep.subr.mxu0 0.0
    %411 = vmatpush2.msra.mxu0 0.0
    %412 = vmatprep.subr.mxu0 0.0
    %413 = vmatpush2.msra.mxu0 0.0
    %414 = vmatprep.subr.mxu0 0.0
    %415 = vmatpush2.msra.mxu0 0.0
    %416 = vmatprep.subr.mxu0 0.0
    %417 = vmatpush2.msra.mxu0 0.0
    %418 = vmatprep.subr.mxu0 0.0
    %419 = vmatpush2.msra.mxu0 0.0
    %420 = vmatprep.subr.mxu0 0.0
    %421 = vmatpush2.msra.mxu0 0.0
    %422 = vmatprep.subr.mxu0 0.0
    %423 = vmatpush2.msra.mxu0 0.0
    %424 = vmatprep.subr.mxu0 0.0
    %425 = vmatpush2.msra.mxu0 0.0
    %426 = vmatprep.subr.mxu0 0.0
    %427 = vmatpush2.msra.mxu0 0.0
    %428 = vmatprep.subr.mxu0 0.0
    %429 = vmatpush2.msra.mxu0 0.0
    %430 = vmatprep.subr.mxu0 0.0
    %431 = vmatpush2.msra.mxu0 0.0
    %432 = vmatprep.subr.mxu0 0.0
    %433 = vmatpush2.msra.mxu0 0.0
    %434 = vmatprep.mubr.f32.mxu0 0.0
    %435 = vmatmul.mubr.f32.gmra.mxu0 %v75
    %v436 = vpop.f32.mrf.mxu0
    %v437 = vadd.f32 %v48, %v436
    %v438 = vpop.f32.mrf.mxu0
    %v439 = vadd.f32 %v48, %v438
    %440 = vmatprep.mubr.f32.mxu0 0.0
    %441 = vmatmul.mubr.f32.gmra.mxu0 %v78
    %v442 = vpop.f32.mrf.mxu0
    %v443 = vadd.f32 %v53, %v442
    %v444 = vpop.f32.mrf.mxu0
    %v445 = vadd.f32 %v53, %v444
    %446 = vmatprep.mubr.f32.mxu0 0.0
    %447 = vmatmul.mubr.f32.gmra.mxu0 %v81
    %v448 = vpop.f32.mrf.mxu0
    %v449 = vadd.f32 %v58, %v448
    %v450 = vpop.f32.mrf.mxu0
    %v451 = vadd.f32 %v58, %v450
    %452 = vmatprep.mubr.f32.mxu0 0.0
    %453 = vmatmul.mubr.f32.gmra.mxu0 %v84
    %v454 = vpop.f32.mrf.mxu0
    %v455 = vadd.f32 %v63, %v454
    %v456 = vpop.f32.mrf.mxu0
    %v457 = vadd.f32 %v63, %v456
    %458 = vdwg.mxu0
    %v459 = vmax.f32 %v170, 0.0
    %v460 = vmax.f32 %v172, 0.0
    %v461 = vmax.f32 %v259, 0.0
    %v462 = vmax.f32 %v261, 0.0
    %v463 = vmax.f32 %v348, 0.0
    %v464 = vmax.f32 %v350, 0.0
    %v465 = vmax.f32 %v437, 0.0
    %v466 = vmax.f32 %v439, 0.0
    %v467 = vmax.f32 %v176, 0.0
    %v468 = vmax.f32 %v178, 0.0
    %v469 = vmax.f32 %v265, 0.0
    %v470 = vmax.f32 %v267, 0.0
    %v471 = vmax.f32 %v354, 0.0
    %v472 = vmax.f32 %v356, 0.0
    %v473 = vmax.f32 %v443, 0.0
    %v474 = vmax.f32 %v445, 0.0
    %v475 = vmax.f32 %v182, 0.0
    %v476 = vmax.f32 %v184, 0.0
    %v477 = vmax.f32 %v271, 0.0
    %v478 = vmax.f32 %v273, 0.0
    %v479 = vmax.f32 %v360, 0.0
    %v480 = vmax.f32 %v362, 0.0
    %v481 = vmax.f32 %v449, 0.0
    %v482 = vmax.f32 %v451, 0.0
    %v483 = vmax.f32 %v188, 0.0
    %v484 = vmax.f32 %v190, 0.0
    %v485 = vmax.f32 %v277, 0.0
    %v486 = vmax.f32 %v279, 0.0
    %v487 = vmax.f32 %v366, 0.0
    %v488 = vmax.f32 %v368, 0.0
    %v489 = vmax.f32 %v455, 0.0
    %v490 = vmax.f32 %v457, 0.0
    %v491 = vld [vmem:[%s3] sm:$0xff]
    %v492 = vld [vmem:[%s3 + $0x8] sm:$0xff]
    %v493 = vld [vmem:[%s3 + $0x10] sm:$0xff]
    %v494 = vld [vmem:[%s3 + $0x18] sm:$0xff]
    %v495 = vld [vmem:[%s4] sm:$0xff]
    %v496 = vld [vmem:[%s4 + $0x8] sm:$0xff]
    %v497 = vld [vmem:[%s4 + $0x10] sm:$0xff]
    %v498 = vld [vmem:[%s4 + $0x18] sm:$0xff]
    %500 = vset.pattern.permute.xlu0 0
    %501 = vperm.xlu0 %500, %v495
    %v502 = vpop.permute.xlu0 %501
    %505 = vset.pattern.permute.xlu0 0
    %506 = vperm.xlu0 %505, %v496
    %v507 = vpop.permute.xlu0 %506
    %510 = vset.pattern.permute.xlu0 0
    %511 = vperm.xlu0 %510, %v497
    %v512 = vpop.permute.xlu0 %511
    %515 = vset.pattern.permute.xlu0 0
    %516 = vperm.xlu0 %515, %v498
    %v517 = vpop.permute.xlu0 %516
    %vm519 = vcmask 261120
    %v521 = vsel %vm519, %v491, 0
    %v524 = vsel %vm519, %v492, 0
    %v527 = vsel %vm519, %v493, 0
    %v530 = vsel %vm519, %v494, 0
    %532 = vmatprep.subr.mxu0 0.0
    %533 = vmatpush1.msra.mxu0 0.0
    %534 = vmatprep.subr.mxu0 0.0
    %535 = vmatpush1.msra.mxu0 0.0
    %536 = vmatprep.subr.mxu0 0.0
    %537 = vmatpush1.msra.mxu0 0.0
    %538 = vmatprep.subr.mxu0 0.0
    %539 = vmatpush1.msra.mxu0 0.0
    %540 = vmatprep.subr.mxu0 0.0
    %541 = vmatpush1.msra.mxu0 0.0
    %542 = vmatprep.subr.mxu0 0.0
    %543 = vmatpush1.msra.mxu0 0.0
    %544 = vmatprep.subr.mxu0 0.0
    %545 = vmatpush1.msra.mxu0 0.0
    %546 = vmatprep.subr.mxu0 0.0
    %547 = vmatpush1.msra.mxu0 0.0
    %548 = vmatprep.subr.mxu0 0.0
    %549 = vmatpush1.msra.mxu0 0.0
    %550 = vmatprep.subr.mxu0 0.0
    %551 = vmatpush1.msra.mxu0 0.0
    %552 = vmatprep.subr.mxu0 0.0
    %553 = vmatpush1.msra.mxu0 0.0
    %554 = vmatprep.subr.mxu0 0.0
    %555 = vmatpush1.msra.mxu0 0.0
    %556 = vmatprep.subr.mxu0 %v484
    %557 = vmatpush1.msra.mxu0 %v483
    %558 = vmatprep.subr.mxu0 %v476
    %559 = vmatpush1.msra.mxu0 %v475
    %560 = vmatprep.subr.mxu0 %v468
    %561 = vmatpush1.msra.mxu0 %v467
    %562 = vmatprep.subr.mxu0 %v460
    %563 = vmatpush1.msra.mxu0 %v459
    %564 = vmatprep.subr.mxu0 0.0
    %565 = vmatpush2.msra.mxu0 0.0
    %566 = vmatprep.subr.mxu0 0.0
    %567 = vmatpush2.msra.mxu0 0.0
    %568 = vmatprep.subr.mxu0 0.0
    %569 = vmatpush2.msra.mxu0 0.0
    %570 = vmatprep.subr.mxu0 0.0
    %571 = vmatpush2.msra.mxu0 0.0
    %572 = vmatprep.subr.mxu0 0.0
    %573 = vmatpush2.msra.mxu0 0.0
    %574 = vmatprep.subr.mxu0 0.0
    %575 = vmatpush2.msra.mxu0 0.0
    %576 = vmatprep.subr.mxu0 0.0
    %577 = vmatpush2.msra.mxu0 0.0
    %578 = vmatprep.subr.mxu0 0.0
    %579 = vmatpush2.msra.mxu0 0.0
    %580 = vmatprep.subr.mxu0 0.0
    %581 = vmatpush2.msra.mxu0 0.0
    %582 = vmatprep.subr.mxu0 0.0
    %583 = vmatpush2.msra.mxu0 0.0
    %584 = vmatprep.subr.mxu0 0.0
    %585 = vmatpush2.msra.mxu0 0.0
    %586 = vmatprep.subr.mxu0 0.0
    %587 = vmatpush2.msra.mxu0 0.0
    %588 = vmatprep.subr.mxu0 0.0
    %589 = vmatpush2.msra.mxu0 0.0
    %590 = vmatprep.subr.mxu0 0.0
    %591 = vmatpush2.msra.mxu0 0.0
    %592 = vmatprep.subr.mxu0 0.0
    %593 = vmatpush2.msra.mxu0 0.0
    %594 = vmatprep.subr.mxu0 0.0
    %595 = vmatpush2.msra.mxu0 0.0
    %596 = vmatprep.mubr.f32.mxu0 0.0
    %597 = vmatmul.mubr.f32.gmra.mxu0 %v521
    %v598 = vpop.f32.mrf.mxu0
    %v599 = vadd.f32 %v502, %v598
    %v600 = vpop.f32.mrf.mxu0
    %v601 = vadd.f32 %v502, %v600
    %602 = vmatprep.mubr.f32.mxu0 0.0
    %603 = vmatmul.mubr.f32.gmra.mxu0 %v524
    %v604 = vpop.f32.mrf.mxu0
    %v605 = vadd.f32 %v507, %v604
    %v606 = vpop.f32.mrf.mxu0
    %v607 = vadd.f32 %v507, %v606
    %608 = vmatprep.mubr.f32.mxu0 0.0
    %609 = vmatmul.mubr.f32.gmra.mxu0 %v527
    %v610 = vpop.f32.mrf.mxu0
    %v611 = vadd.f32 %v512, %v610
    %v612 = vpop.f32.mrf.mxu0
    %v613 = vadd.f32 %v512, %v612
    %614 = vmatprep.mubr.f32.mxu0 0.0
    %615 = vmatmul.mubr.f32.gmra.mxu0 %v530
    %v616 = vpop.f32.mrf.mxu0
    %v617 = vadd.f32 %v517, %v616
    %v618 = vpop.f32.mrf.mxu0
    %v619 = vadd.f32 %v517, %v618
    %620 = vdwg.mxu0
    %621 = vmatprep.subr.mxu0 0.0
    %622 = vmatpush1.msra.mxu0 0.0
    %623 = vmatprep.subr.mxu0 0.0
    %624 = vmatpush1.msra.mxu0 0.0
    %625 = vmatprep.subr.mxu0 0.0
    %626 = vmatpush1.msra.mxu0 0.0
    %627 = vmatprep.subr.mxu0 0.0
    %628 = vmatpush1.msra.mxu0 0.0
    %629 = vmatprep.subr.mxu0 0.0
    %630 = vmatpush1.msra.mxu0 0.0
    %631 = vmatprep.subr.mxu0 0.0
    %632 = vmatpush1.msra.mxu0 0.0
    %633 = vmatprep.subr.mxu0 0.0
    %634 = vmatpush1.msra.mxu0 0.0
    %635 = vmatprep.subr.mxu0 0.0
    %636 = vmatpush1.msra.mxu0 0.0
    %637 = vmatprep.subr.mxu0 0.0
    %638 = vmatpush1.msra.mxu0 0.0
    %639 = vmatprep.subr.mxu0 0.0
    %640 = vmatpush1.msra.mxu0 0.0
    %641 = vmatprep.subr.mxu0 0.0
    %642 = vmatpush1.msra.mxu0 0.0
    %643 = vmatprep.subr.mxu0 0.0
    %644 = vmatpush1.msra.mxu0 0.0
    %645 = vmatprep.subr.mxu0 %v486
    %646 = vmatpush1.msra.mxu0 %v485
    %647 = vmatprep.subr.mxu0 %v478
    %648 = vmatpush1.msra.mxu0 %v477
    %649 = vmatprep.subr.mxu0 %v470
    %650 = vmatpush1.msra.mxu0 %v469
    %651 = vmatprep.subr.mxu0 %v462
    %652 = vmatpush1.msra.mxu0 %v461
    %653 = vmatprep.subr.mxu0 0.0
    %654 = vmatpush2.msra.mxu0 0.0
    %655 = vmatprep.subr.mxu0 0.0
    %656 = vmatpush2.msra.mxu0 0.0
    %657 = vmatprep.subr.mxu0 0.0
    %658 = vmatpush2.msra.mxu0 0.0
    %659 = vmatprep.subr.mxu0 0.0
    %660 = vmatpush2.msra.mxu0 0.0
    %661 = vmatprep.subr.mxu0 0.0
    %662 = vmatpush2.msra.mxu0 0.0
    %663 = vmatprep.subr.mxu0 0.0
    %664 = vmatpush2.msra.mxu0 0.0
    %665 = vmatprep.subr.mxu0 0.0
    %666 = vmatpush2.msra.mxu0 0.0
    %667 = vmatprep.subr.mxu0 0.0
    %668 = vmatpush2.msra.mxu0 0.0
    %669 = vmatprep.subr.mxu0 0.0
    %670 = vmatpush2.msra.mxu0 0.0
    %671 = vmatprep.subr.mxu0 0.0
    %672 = vmatpush2.msra.mxu0 0.0
    %673 = vmatprep.subr.mxu0 0.0
    %674 = vmatpush2.msra.mxu0 0.0
    %675 = vmatprep.subr.mxu0 0.0
    %676 = vmatpush2.msra.mxu0 0.0
    %677 = vmatprep.subr.mxu0 0.0
    %678 = vmatpush2.msra.mxu0 0.0
    %679 = vmatprep.subr.mxu0 0.0
    %680 = vmatpush2.msra.mxu0 0.0
    %681 = vmatprep.subr.mxu0 0.0
    %682 = vmatpush2.msra.mxu0 0.0
    %683 = vmatprep.subr.mxu0 0.0
    %684 = vmatpush2.msra.mxu0 0.0
    %685 = vmatprep.mubr.f32.mxu0 0.0
    %686 = vmatmul.mubr.f32.gmra.mxu0 %v521
    %v687 = vpop.f32.mrf.mxu0
    %v688 = vadd.f32 %v502, %v687
    %v689 = vpop.f32.mrf.mxu0
    %v690 = vadd.f32 %v502, %v689
    %691 = vmatprep.mubr.f32.mxu0 0.0
    %692 = vmatmul.mubr.f32.gmra.mxu0 %v524
    %v693 = vpop.f32.mrf.mxu0
    %v694 = vadd.f32 %v507, %v693
    %v695 = vpop.f32.mrf.mxu0
    %v696 = vadd.f32 %v507, %v695
    %697 = vmatprep.mubr.f32.mxu0 0.0
    %698 = vmatmul.mubr.f32.gmra.mxu0 %v527
    %v699 = vpop.f32.mrf.mxu0
    %v700 = vadd.f32 %v512, %v699
    %v701 = vpop.f32.mrf.mxu0
    %v702 = vadd.f32 %v512, %v701
    %703 = vmatprep.mubr.f32.mxu0 0.0
    %704 = vmatmul.mubr.f32.gmra.mxu0 %v530
    %v705 = vpop.f32.mrf.mxu0
    %v706 = vadd.f32 %v517, %v705
    %v707 = vpop.f32.mrf.mxu0
    %v708 = vadd.f32 %v517, %v707
    %709 = vdwg.mxu0
    %710 = vmatprep.subr.mxu0 0.0
    %711 = vmatpush1.msra.mxu0 0.0
    %712 = vmatprep.subr.mxu0 0.0
    %713 = vmatpush1.msra.mxu0 0.0
    %714 = vmatprep.subr.mxu0 0.0
    %715 = vmatpush1.msra.mxu0 0.0
    %716 = vmatprep.subr.mxu0 0.0
    %717 = vmatpush1.msra.mxu0 0.0
    %718 = vmatprep.subr.mxu0 0.0
    %719 = vmatpush1.msra.mxu0 0.0
    %720 = vmatprep.subr.mxu0 0.0
    %721 = vmatpush1.msra.mxu0 0.0
    %722 = vmatprep.subr.mxu0 0.0
    %723 = vmatpush1.msra.mxu0 0.0
    %724 = vmatprep.subr.mxu0 0.0
    %725 = vmatpush1.msra.mxu0 0.0
    %726 = vmatprep.subr.mxu0 0.0
    %727 = vmatpush1.msra.mxu0 0.0
    %728 = vmatprep.subr.mxu0 0.0
    %729 = vmatpush1.msra.mxu0 0.0
    %730 = vmatprep.subr.mxu0 0.0
    %731 = vmatpush1.msra.mxu0 0.0
    %732 = vmatprep.subr.mxu0 0.0
    %733 = vmatpush1.msra.mxu0 0.0
    %734 = vmatprep.subr.mxu0 %v488
    %735 = vmatpush1.msra.mxu0 %v487
    %736 = vmatprep.subr.mxu0 %v480
    %737 = vmatpush1.msra.mxu0 %v479
    %738 = vmatprep.subr.mxu0 %v472
    %739 = vmatpush1.msra.mxu0 %v471
    %740 = vmatprep.subr.mxu0 %v464
    %741 = vmatpush1.msra.mxu0 %v463
    %742 = vmatprep.subr.mxu0 0.0
    %743 = vmatpush2.msra.mxu0 0.0
    %744 = vmatprep.subr.mxu0 0.0
    %745 = vmatpush2.msra.mxu0 0.0
    %746 = vmatprep.subr.mxu0 0.0
    %747 = vmatpush2.msra.mxu0 0.0
    %748 = vmatprep.subr.mxu0 0.0
    %749 = vmatpush2.msra.mxu0 0.0
    %750 = vmatprep.subr.mxu0 0.0
    %751 = vmatpush2.msra.mxu0 0.0
    %752 = vmatprep.subr.mxu0 0.0
    %753 = vmatpush2.msra.mxu0 0.0
    %754 = vmatprep.subr.mxu0 0.0
    %755 = vmatpush2.msra.mxu0 0.0
    %756 = vmatprep.subr.mxu0 0.0
    %757 = vmatpush2.msra.mxu0 0.0
    %758 = vmatprep.subr.mxu0 0.0
    %759 = vmatpush2.msra.mxu0 0.0
    %760 = vmatprep.subr.mxu0 0.0
    %761 = vmatpush2.msra.mxu0 0.0
    %762 = vmatprep.subr.mxu0 0.0
    %763 = vmatpush2.msra.mxu0 0.0
    %764 = vmatprep.subr.mxu0 0.0
    %765 = vmatpush2.msra.mxu0 0.0
    %766 = vmatprep.subr.mxu0 0.0
    %767 = vmatpush2.msra.mxu0 0.0
    %768 = vmatprep.subr.mxu0 0.0
    %769 = vmatpush2.msra.mxu0 0.0
    %770 = vmatprep.subr.mxu0 0.0
    %771 = vmatpush2.msra.mxu0 0.0
    %772 = vmatprep.subr.mxu0 0.0
    %773 = vmatpush2.msra.mxu0 0.0
    %774 = vmatprep.mubr.f32.mxu0 0.0
    %775 = vmatmul.mubr.f32.gmra.mxu0 %v521
    %v776 = vpop.f32.mrf.mxu0
    %v777 = vadd.f32 %v502, %v776
    %v778 = vpop.f32.mrf.mxu0
    %v779 = vadd.f32 %v502, %v778
    %780 = vmatprep.mubr.f32.mxu0 0.0
    %781 = vmatmul.mubr.f32.gmra.mxu0 %v524
    %v782 = vpop.f32.mrf.mxu0
    %v783 = vadd.f32 %v507, %v782
    %v784 = vpop.f32.mrf.mxu0
    %v785 = vadd.f32 %v507, %v784
    %786 = vmatprep.mubr.f32.mxu0 0.0
    %787 = vmatmul.mubr.f32.gmra.mxu0 %v527
    %v788 = vpop.f32.mrf.mxu0
    %v789 = vadd.f32 %v512, %v788
    %v790 = vpop.f32.mrf.mxu0
    %v791 = vadd.f32 %v512, %v790
    %792 = vmatprep.mubr.f32.mxu0 0.0
    %793 = vmatmul.mubr.f32.gmra.mxu0 %v530
    %v794 = vpop.f32.mrf.mxu0
    %v795 = vadd.f32 %v517, %v794
    %v796 = vpop.f32.mrf.mxu0
    %v797 = vadd.f32 %v517, %v796
    %798 = vdwg.mxu0
    %799 = vmatprep.subr.mxu0 0.0
    %800 = vmatpush1.msra.mxu0 0.0
    %801 = vmatprep.subr.mxu0 0.0
    %802 = vmatpush1.msra.mxu0 0.0
    %803 = vmatprep.subr.mxu0 0.0
    %804 = vmatpush1.msra.mxu0 0.0
    %805 = vmatprep.subr.mxu0 0.0
    %806 = vmatpush1.msra.mxu0 0.0
    %807 = vmatprep.subr.mxu0 0.0
    %808 = vmatpush1.msra.mxu0 0.0
    %809 = vmatprep.subr.mxu0 0.0
    %810 = vmatpush1.msra.mxu0 0.0
    %811 = vmatprep.subr.mxu0 0.0
    %812 = vmatpush1.msra.mxu0 0.0
    %813 = vmatprep.subr.mxu0 0.0
    %814 = vmatpush1.msra.mxu0 0.0
    %815 = vmatprep.subr.mxu0 0.0
    %816 = vmatpush1.msra.mxu0 0.0
    %817 = vmatprep.subr.mxu0 0.0
    %818 = vmatpush1.msra.mxu0 0.0
    %819 = vmatprep.subr.mxu0 0.0
    %820 = vmatpush1.msra.mxu0 0.0
    %821 = vmatprep.subr.mxu0 0.0
    %822 = vmatpush1.msra.mxu0 0.0
    %823 = vmatprep.subr.mxu0 %v490
    %824 = vmatpush1.msra.mxu0 %v489
    %825 = vmatprep.subr.mxu0 %v482
    %826 = vmatpush1.msra.mxu0 %v481
    %827 = vmatprep.subr.mxu0 %v474
    %828 = vmatpush1.msra.mxu0 %v473
    %829 = vmatprep.subr.mxu0 %v466
    %830 = vmatpush1.msra.mxu0 %v465
    %831 = vmatprep.subr.mxu0 0.0
    %832 = vmatpush2.msra.mxu0 0.0
    %833 = vmatprep.subr.mxu0 0.0
    %834 = vmatpush2.msra.mxu0 0.0
    %835 = vmatprep.subr.mxu0 0.0
    %836 = vmatpush2.msra.mxu0 0.0
    %837 = vmatprep.subr.mxu0 0.0
    %838 = vmatpush2.msra.mxu0 0.0
    %839 = vmatprep.subr.mxu0 0.0
    %840 = vmatpush2.msra.mxu0 0.0
    %841 = vmatprep.subr.mxu0 0.0
    %842 = vmatpush2.msra.mxu0 0.0
    %843 = vmatprep.subr.mxu0 0.0
    %844 = vmatpush2.msra.mxu0 0.0
    %845 = vmatprep.subr.mxu0 0.0
    %846 = vmatpush2.msra.mxu0 0.0
    %847 = vmatprep.subr.mxu0 0.0
    %848 = vmatpush2.msra.mxu0 0.0
    %849 = vmatprep.subr.mxu0 0.0
    %850 = vmatpush2.msra.mxu0 0.0
    %851 = vmatprep.subr.mxu0 0.0
    %852 = vmatpush2.msra.mxu0 0.0
    %853 = vmatprep.subr.mxu0 0.0
    %854 = vmatpush2.msra.mxu0 0.0
    %855 = vmatprep.subr.mxu0 0.0
    %856 = vmatpush2.msra.mxu0 0.0
    %857 = vmatprep.subr.mxu0 0.0
    %858 = vmatpush2.msra.mxu0 0.0
    %859 = vmatprep.subr.mxu0 0.0
    %860 = vmatpush2.msra.mxu0 0.0
    %861 = vmatprep.subr.mxu0 0.0
    %862 = vmatpush2.msra.mxu0 0.0
    %863 = vmatprep.mubr.f32.mxu0 0.0
    %864 = vmatmul.mubr.f32.gmra.mxu0 %v521
    %v865 = vpop.f32.mrf.mxu0
    %v866 = vadd.f32 %v502, %v865
    %v867 = vpop.f32.mrf.mxu0
    %v868 = vadd.f32 %v502, %v867
    %869 = vmatprep.mubr.f32.mxu0 0.0
    %870 = vmatmul.mubr.f32.gmra.mxu0 %v524
    %v871 = vpop.f32.mrf.mxu0
    %v872 = vadd.f32 %v507, %v871
    %v873 = vpop.f32.mrf.mxu0
    %v874 = vadd.f32 %v507, %v873
    %875 = vmatprep.mubr.f32.mxu0 0.0
    %876 = vmatmul.mubr.f32.gmra.mxu0 %v527
    %v877 = vpop.f32.mrf.mxu0
    %v878 = vadd.f32 %v512, %v877
    %v879 = vpop.f32.mrf.mxu0
    %v880 = vadd.f32 %v512, %v879
    %881 = vmatprep.mubr.f32.mxu0 0.0
    %882 = vmatmul.mubr.f32.gmra.mxu0 %v530
    %v883 = vpop.f32.mrf.mxu0
    %v884 = vadd.f32 %v517, %v883
    %v885 = vpop.f32.mrf.mxu0
    %v886 = vadd.f32 %v517, %v885
    %887 = vdwg.mxu0
    %v888 = vmax.f32 %v599, 0.0
    %v889 = vmax.f32 %v601, 0.0
    %v890 = vmax.f32 %v688, 0.0
    %v891 = vmax.f32 %v690, 0.0
    %v892 = vmax.f32 %v777, 0.0
    %v893 = vmax.f32 %v779, 0.0
    %v894 = vmax.f32 %v866, 0.0
    %v895 = vmax.f32 %v868, 0.0
    %v896 = vmax.f32 %v605, 0.0
    %v897 = vmax.f32 %v607, 0.0
    %v898 = vmax.f32 %v694, 0.0
    %v899 = vmax.f32 %v696, 0.0
    %v900 = vmax.f32 %v783, 0.0
    %v901 = vmax.f32 %v785, 0.0
    %v902 = vmax.f32 %v872, 0.0
    %v903 = vmax.f32 %v874, 0.0
    %v904 = vmax.f32 %v611, 0.0
    %v905 = vmax.f32 %v613, 0.0
    %v906 = vmax.f32 %v700, 0.0
    %v907 = vmax.f32 %v702, 0.0
    %v908 = vmax.f32 %v789, 0.0
    %v909 = vmax.f32 %v791, 0.0
    %v910 = vmax.f32 %v878, 0.0
    %v911 = vmax.f32 %v880, 0.0
    %v912 = vmax.f32 %v617, 0.0
    %v913 = vmax.f32 %v619, 0.0
    %v914 = vmax.f32 %v706, 0.0
    %v915 = vmax.f32 %v708, 0.0
    %v916 = vmax.f32 %v795, 0.0
    %v917 = vmax.f32 %v797, 0.0
    %v918 = vmax.f32 %v884, 0.0
    %v919 = vmax.f32 %v886, 0.0
    %v920 = vld [vmem:[%s5] sm:$0xff]
    %v921 = vld [vmem:[%s5 + $0x8] sm:$0xff]
    %v922 = vld [vmem:[%s5 + $0x10] sm:$0xff]
    %v923 = vld [vmem:[%s5 + $0x18] sm:$0xff]
    %v924 = vld [vmem:[%s6] sm:$0xff]
    %v925 = vld [vmem:[%s6 + $0x8] sm:$0xff]
    %v926 = vld [vmem:[%s6 + $0x10] sm:$0xff]
    %v927 = vld [vmem:[%s6 + $0x18] sm:$0xff]
    %929 = vset.pattern.permute.xlu0 0
    %930 = vperm.xlu0 %929, %v924
    %v931 = vpop.permute.xlu0 %930
    %934 = vset.pattern.permute.xlu0 0
    %935 = vperm.xlu0 %934, %v925
    %v936 = vpop.permute.xlu0 %935
    %939 = vset.pattern.permute.xlu0 0
    %940 = vperm.xlu0 %939, %v926
    %v941 = vpop.permute.xlu0 %940
    %944 = vset.pattern.permute.xlu0 0
    %945 = vperm.xlu0 %944, %v927
    %v946 = vpop.permute.xlu0 %945
    %v949 = vsel %vm519, %v920, 0
    %v952 = vsel %vm519, %v921, 0
    %v955 = vsel %vm519, %v922, 0
    %v958 = vsel %vm519, %v923, 0
    %960 = vmatprep.subr.mxu0 0.0
    %961 = vmatpush1.msra.mxu0 0.0
    %962 = vmatprep.subr.mxu0 0.0
    %963 = vmatpush1.msra.mxu0 0.0
    %964 = vmatprep.subr.mxu0 0.0
    %965 = vmatpush1.msra.mxu0 0.0
    %966 = vmatprep.subr.mxu0 0.0
    %967 = vmatpush1.msra.mxu0 0.0
    %968 = vmatprep.subr.mxu0 0.0
    %969 = vmatpush1.msra.mxu0 0.0
    %970 = vmatprep.subr.mxu0 0.0
    %971 = vmatpush1.msra.mxu0 0.0
    %972 = vmatprep.subr.mxu0 0.0
    %973 = vmatpush1.msra.mxu0 0.0
    %974 = vmatprep.subr.mxu0 0.0
    %975 = vmatpush1.msra.mxu0 0.0
    %976 = vmatprep.subr.mxu0 0.0
    %977 = vmatpush1.msra.mxu0 0.0
    %978 = vmatprep.subr.mxu0 0.0
    %979 = vmatpush1.msra.mxu0 0.0
    %980 = vmatprep.subr.mxu0 0.0
    %981 = vmatpush1.msra.mxu0 0.0
    %982 = vmatprep.subr.mxu0 0.0
    %983 = vmatpush1.msra.mxu0 0.0
    %984 = vmatprep.subr.mxu0 %v913
    %985 = vmatpush1.msra.mxu0 %v912
    %986 = vmatprep.subr.mxu0 %v905
    %987 = vmatpush1.msra.mxu0 %v904
    %988 = vmatprep.subr.mxu0 %v897
    %989 = vmatpush1.msra.mxu0 %v896
    %990 = vmatprep.subr.mxu0 %v889
    %991 = vmatpush1.msra.mxu0 %v888
    %992 = vmatprep.subr.mxu0 0.0
    %993 = vmatpush2.msra.mxu0 0.0
    %994 = vmatprep.subr.mxu0 0.0
    %995 = vmatpush2.msra.mxu0 0.0
    %996 = vmatprep.subr.mxu0 0.0
    %997 = vmatpush2.msra.mxu0 0.0
    %998 = vmatprep.subr.mxu0 0.0
    %999 = vmatpush2.msra.mxu0 0.0
    %1000 = vmatprep.subr.mxu0 0.0
    %1001 = vmatpush2.msra.mxu0 0.0
    %1002 = vmatprep.subr.mxu0 0.0
    %1003 = vmatpush2.msra.mxu0 0.0
    %1004 = vmatprep.subr.mxu0 0.0
    %1005 = vmatpush2.msra.mxu0 0.0
    %1006 = vmatprep.subr.mxu0 0.0
    %1007 = vmatpush2.msra.mxu0 0.0
    %1008 = vmatprep.subr.mxu0 0.0
    %1009 = vmatpush2.msra.mxu0 0.0
    %1010 = vmatprep.subr.mxu0 0.0
    %1011 = vmatpush2.msra.mxu0 0.0
    %1012 = vmatprep.subr.mxu0 0.0
    %1013 = vmatpush2.msra.mxu0 0.0
    %1014 = vmatprep.subr.mxu0 0.0
    %1015 = vmatpush2.msra.mxu0 0.0
    %1016 = vmatprep.subr.mxu0 0.0
    %1017 = vmatpush2.msra.mxu0 0.0
    %1018 = vmatprep.subr.mxu0 0.0
    %1019 = vmatpush2.msra.mxu0 0.0
    %1020 = vmatprep.subr.mxu0 0.0
    %1021 = vmatpush2.msra.mxu0 0.0
    %1022 = vmatprep.subr.mxu0 0.0
    %1023 = vmatpush2.msra.mxu0 0.0
    %1024 = vmatprep.mubr.f32.mxu0 0.0
    %1025 = vmatmul.mubr.f32.gmra.mxu0 %v949
    %v1026 = vpop.f32.mrf.mxu0
    %v1027 = vadd.f32 %v931, %v1026
    %v1028 = vpop.f32.mrf.mxu0
    %v1029 = vadd.f32 %v931, %v1028
    %1030 = vmatprep.mubr.f32.mxu0 0.0
    %1031 = vmatmul.mubr.f32.gmra.mxu0 %v952
    %v1032 = vpop.f32.mrf.mxu0
    %v1033 = vadd.f32 %v936, %v1032
    %v1034 = vpop.f32.mrf.mxu0
    %v1035 = vadd.f32 %v936, %v1034
    %1036 = vmatprep.mubr.f32.mxu0 0.0
    %1037 = vmatmul.mubr.f32.gmra.mxu0 %v955
    %v1038 = vpop.f32.mrf.mxu0
    %v1039 = vadd.f32 %v941, %v1038
    %v1040 = vpop.f32.mrf.mxu0
    %v1041 = vadd.f32 %v941, %v1040
    %1042 = vmatprep.mubr.f32.mxu0 0.0
    %1043 = vmatmul.mubr.f32.gmra.mxu0 %v958
    %v1044 = vpop.f32.mrf.mxu0
    %v1045 = vadd.f32 %v946, %v1044
    %v1046 = vpop.f32.mrf.mxu0
    %v1047 = vadd.f32 %v946, %v1046
    %1048 = vdwg.mxu0
    %1049 = vmatprep.subr.mxu0 0.0
    %1050 = vmatpush1.msra.mxu0 0.0
    %1051 = vmatprep.subr.mxu0 0.0
    %1052 = vmatpush1.msra.mxu0 0.0
    %1053 = vmatprep.subr.mxu0 0.0
    %1054 = vmatpush1.msra.mxu0 0.0
    %1055 = vmatprep.subr.mxu0 0.0
    %1056 = vmatpush1.msra.mxu0 0.0
    %1057 = vmatprep.subr.mxu0 0.0
    %1058 = vmatpush1.msra.mxu0 0.0
    %1059 = vmatprep.subr.mxu0 0.0
    %1060 = vmatpush1.msra.mxu0 0.0
    %1061 = vmatprep.subr.mxu0 0.0
    %1062 = vmatpush1.msra.mxu0 0.0
    %1063 = vmatprep.subr.mxu0 0.0
    %1064 = vmatpush1.msra.mxu0 0.0
    %1065 = vmatprep.subr.mxu0 0.0
    %1066 = vmatpush1.msra.mxu0 0.0
    %1067 = vmatprep.subr.mxu0 0.0
    %1068 = vmatpush1.msra.mxu0 0.0
    %1069 = vmatprep.subr.mxu0 0.0
    %1070 = vmatpush1.msra.mxu0 0.0
    %1071 = vmatprep.subr.mxu0 0.0
    %1072 = vmatpush1.msra.mxu0 0.0
    %1073 = vmatprep.subr.mxu0 %v915
    %1074 = vmatpush1.msra.mxu0 %v914
    %1075 = vmatprep.subr.mxu0 %v907
    %1076 = vmatpush1.msra.mxu0 %v906
    %1077 = vmatprep.subr.mxu0 %v899
    %1078 = vmatpush1.msra.mxu0 %v898
    %1079 = vmatprep.subr.mxu0 %v891
    %1080 = vmatpush1.msra.mxu0 %v890
    %1081 = vmatprep.subr.mxu0 0.0
    %1082 = vmatpush2.msra.mxu0 0.0
    %1083 = vmatprep.subr.mxu0 0.0
    %1084 = vmatpush2.msra.mxu0 0.0
    %1085 = vmatprep.subr.mxu0 0.0
    %1086 = vmatpush2.msra.mxu0 0.0
    %1087 = vmatprep.subr.mxu0 0.0
    %1088 = vmatpush2.msra.mxu0 0.0
    %1089 = vmatprep.subr.mxu0 0.0
    %1090 = vmatpush2.msra.mxu0 0.0
    %1091 = vmatprep.subr.mxu0 0.0
    %1092 = vmatpush2.msra.mxu0 0.0
    %1093 = vmatprep.subr.mxu0 0.0
    %1094 = vmatpush2.msra.mxu0 0.0
    %1095 = vmatprep.subr.mxu0 0.0
    %1096 = vmatpush2.msra.mxu0 0.0
    %1097 = vmatprep.subr.mxu0 0.0
    %1098 = vmatpush2.msra.mxu0 0.0
    %1099 = vmatprep.subr.mxu0 0.0
    %1100 = vmatpush2.msra.mxu0 0.0
    %1101 = vmatprep.subr.mxu0 0.0
    %1102 = vmatpush2.msra.mxu0 0.0
    %1103 = vmatprep.subr.mxu0 0.0
    %1104 = vmatpush2.msra.mxu0 0.0
    %1105 = vmatprep.subr.mxu0 0.0
    %1106 = vmatpush2.msra.mxu0 0.0
    %1107 = vmatprep.subr.mxu0 0.0
    %1108 = vmatpush2.msra.mxu0 0.0
    %1109 = vmatprep.subr.mxu0 0.0
    %1110 = vmatpush2.msra.mxu0 0.0
    %1111 = vmatprep.subr.mxu0 0.0
    %1112 = vmatpush2.msra.mxu0 0.0
    %1113 = vmatprep.mubr.f32.mxu0 0.0
    %1114 = vmatmul.mubr.f32.gmra.mxu0 %v949
    %v1115 = vpop.f32.mrf.mxu0
    %v1116 = vadd.f32 %v931, %v1115
    %v1117 = vpop.f32.mrf.mxu0
    %v1118 = vadd.f32 %v931, %v1117
    %1119 = vmatprep.mubr.f32.mxu0 0.0
    %1120 = vmatmul.mubr.f32.gmra.mxu0 %v952
    %v1121 = vpop.f32.mrf.mxu0
    %v1122 = vadd.f32 %v936, %v1121
    %v1123 = vpop.f32.mrf.mxu0
    %v1124 = vadd.f32 %v936, %v1123
    %1125 = vmatprep.mubr.f32.mxu0 0.0
    %1126 = vmatmul.mubr.f32.gmra.mxu0 %v955
    %v1127 = vpop.f32.mrf.mxu0
    %v1128 = vadd.f32 %v941, %v1127
    %v1129 = vpop.f32.mrf.mxu0
    %v1130 = vadd.f32 %v941, %v1129
    %1131 = vmatprep.mubr.f32.mxu0 0.0
    %1132 = vmatmul.mubr.f32.gmra.mxu0 %v958
    %v1133 = vpop.f32.mrf.mxu0
    %v1134 = vadd.f32 %v946, %v1133
    %v1135 = vpop.f32.mrf.mxu0
    %v1136 = vadd.f32 %v946, %v1135
    %1137 = vdwg.mxu0
    %1138 = vmatprep.subr.mxu0 0.0
    %1139 = vmatpush1.msra.mxu0 0.0
    %1140 = vmatprep.subr.mxu0 0.0
    %1141 = vmatpush1.msra.mxu0 0.0
    %1142 = vmatprep.subr.mxu0 0.0
    %1143 = vmatpush1.msra.mxu0 0.0
    %1144 = vmatprep.subr.mxu0 0.0
    %1145 = vmatpush1.msra.mxu0 0.0
    %1146 = vmatprep.subr.mxu0 0.0
    %1147 = vmatpush1.msra.mxu0 0.0
    %1148 = vmatprep.subr.mxu0 0.0
    %1149 = vmatpush1.msra.mxu0 0.0
    %1150 = vmatprep.subr.mxu0 0.0
    %1151 = vmatpush1.msra.mxu0 0.0
    %1152 = vmatprep.subr.mxu0 0.0
    %1153 = vmatpush1.msra.mxu0 0.0
    %1154 = vmatprep.subr.mxu0 0.0
    %1155 = vmatpush1.msra.mxu0 0.0
    %1156 = vmatprep.subr.mxu0 0.0
    %1157 = vmatpush1.msra.mxu0 0.0
    %1158 = vmatprep.subr.mxu0 0.0
    %1159 = vmatpush1.msra.mxu0 0.0
    %1160 = vmatprep.subr.mxu0 0.0
    %1161 = vmatpush1.msra.mxu0 0.0
    %1162 = vmatprep.subr.mxu0 %v917
    %1163 = vmatpush1.msra.mxu0 %v916
    %1164 = vmatprep.subr.mxu0 %v909
    %1165 = vmatpush1.msra.mxu0 %v908
    %1166 = vmatprep.subr.mxu0 %v901
    %1167 = vmatpush1.msra.mxu0 %v900
    %1168 = vmatprep.subr.mxu0 %v893
    %1169 = vmatpush1.msra.mxu0 %v892
    %1170 = vmatprep.subr.mxu0 0.0
    %1171 = vmatpush2.msra.mxu0 0.0
    %1172 = vmatprep.subr.mxu0 0.0
    %1173 = vmatpush2.msra.mxu0 0.0
    %1174 = vmatprep.subr.mxu0 0.0
    %1175 = vmatpush2.msra.mxu0 0.0
    %1176 = vmatprep.subr.mxu0 0.0
    %1177 = vmatpush2.msra.mxu0 0.0
    %1178 = vmatprep.subr.mxu0 0.0
    %1179 = vmatpush2.msra.mxu0 0.0
    %1180 = vmatprep.subr.mxu0 0.0
    %1181 = vmatpush2.msra.mxu0 0.0
    %1182 = vmatprep.subr.mxu0 0.0
    %1183 = vmatpush2.msra.mxu0 0.0
    %1184 = vmatprep.subr.mxu0 0.0
    %1185 = vmatpush2.msra.mxu0 0.0
    %1186 = vmatprep.subr.mxu0 0.0
    %1187 = vmatpush2.msra.mxu0 0.0
    %1188 = vmatprep.subr.mxu0 0.0
    %1189 = vmatpush2.msra.mxu0 0.0
    %1190 = vmatprep.subr.mxu0 0.0
    %1191 = vmatpush2.msra.mxu0 0.0
    %1192 = vmatprep.subr.mxu0 0.0
    %1193 = vmatpush2.msra.mxu0 0.0
    %1194 = vmatprep.subr.mxu0 0.0
    %1195 = vmatpush2.msra.mxu0 0.0
    %1196 = vmatprep.subr.mxu0 0.0
    %1197 = vmatpush2.msra.mxu0 0.0
    %1198 = vmatprep.subr.mxu0 0.0
    %1199 = vmatpush2.msra.mxu0 0.0
    %1200 = vmatprep.subr.mxu0 0.0
    %1201 = vmatpush2.msra.mxu0 0.0
    %1202 = vmatprep.mubr.f32.mxu0 0.0
    %1203 = vmatmul.mubr.f32.gmra.mxu0 %v949
    %v1204 = vpop.f32.mrf.mxu0
    %v1205 = vadd.f32 %v931, %v1204
    %v1206 = vpop.f32.mrf.mxu0
    %v1207 = vadd.f32 %v931, %v1206
    %1208 = vmatprep.mubr.f32.mxu0 0.0
    %1209 = vmatmul.mubr.f32.gmra.mxu0 %v952
    %v1210 = vpop.f32.mrf.mxu0
    %v1211 = vadd.f32 %v936, %v1210
    %v1212 = vpop.f32.mrf.mxu0
    %v1213 = vadd.f32 %v936, %v1212
    %1214 = vmatprep.mubr.f32.mxu0 0.0
    %1215 = vmatmul.mubr.f32.gmra.mxu0 %v955
    %v1216 = vpop.f32.mrf.mxu0
    %v1217 = vadd.f32 %v941, %v1216
    %v1218 = vpop.f32.mrf.mxu0
    %v1219 = vadd.f32 %v941, %v1218
    %1220 = vmatprep.mubr.f32.mxu0 0.0
    %1221 = vmatmul.mubr.f32.gmra.mxu0 %v958
    %v1222 = vpop.f32.mrf.mxu0
    %v1223 = vadd.f32 %v946, %v1222
    %v1224 = vpop.f32.mrf.mxu0
    %v1225 = vadd.f32 %v946, %v1224
    %1226 = vdwg.mxu0
    %1227 = vmatprep.subr.mxu0 0.0
    %1228 = vmatpush1.msra.mxu0 0.0
    %1229 = vmatprep.subr.mxu0 0.0
    %1230 = vmatpush1.msra.mxu0 0.0
    %1231 = vmatprep.subr.mxu0 0.0
    %1232 = vmatpush1.msra.mxu0 0.0
    %1233 = vmatprep.subr.mxu0 0.0
    %1234 = vmatpush1.msra.mxu0 0.0
    %1235 = vmatprep.subr.mxu0 0.0
    %1236 = vmatpush1.msra.mxu0 0.0
    %1237 = vmatprep.subr.mxu0 0.0
    %1238 = vmatpush1.msra.mxu0 0.0
    %1239 = vmatprep.subr.mxu0 0.0
    %1240 = vmatpush1.msra.mxu0 0.0
    %1241 = vmatprep.subr.mxu0 0.0
    %1242 = vmatpush1.msra.mxu0 0.0
    %1243 = vmatprep.subr.mxu0 0.0
    %1244 = vmatpush1.msra.mxu0 0.0
    %1245 = vmatprep.subr.mxu0 0.0
    %1246 = vmatpush1.msra.mxu0 0.0
    %1247 = vmatprep.subr.mxu0 0.0
    %1248 = vmatpush1.msra.mxu0 0.0
    %1249 = vmatprep.subr.mxu0 0.0
    %1250 = vmatpush1.msra.mxu0 0.0
    %1251 = vmatprep.subr.mxu0 %v919
    %1252 = vmatpush1.msra.mxu0 %v918
    %1253 = vmatprep.subr.mxu0 %v911
    %1254 = vmatpush1.msra.mxu0 %v910
    %1255 = vmatprep.subr.mxu0 %v903
    %1256 = vmatpush1.msra.mxu0 %v902
    %1257 = vmatprep.subr.mxu0 %v895
    %1258 = vmatpush1.msra.mxu0 %v894
    %1259 = vmatprep.subr.mxu0 0.0
    %1260 = vmatpush2.msra.mxu0 0.0
    %1261 = vmatprep.subr.mxu0 0.0
    %1262 = vmatpush2.msra.mxu0 0.0
    %1263 = vmatprep.subr.mxu0 0.0
    %1264 = vmatpush2.msra.mxu0 0.0
    %1265 = vmatprep.subr.mxu0 0.0
    %1266 = vmatpush2.msra.mxu0 0.0
    %1267 = vmatprep.subr.mxu0 0.0
    %1268 = vmatpush2.msra.mxu0 0.0
    %1269 = vmatprep.subr.mxu0 0.0
    %1270 = vmatpush2.msra.mxu0 0.0
    %1271 = vmatprep.subr.mxu0 0.0
    %1272 = vmatpush2.msra.mxu0 0.0
    %1273 = vmatprep.subr.mxu0 0.0
    %1274 = vmatpush2.msra.mxu0 0.0
    %1275 = vmatprep.subr.mxu0 0.0
    %1276 = vmatpush2.msra.mxu0 0.0
    %1277 = vmatprep.subr.mxu0 0.0
    %1278 = vmatpush2.msra.mxu0 0.0
    %1279 = vmatprep.subr.mxu0 0.0
    %1280 = vmatpush2.msra.mxu0 0.0
    %1281 = vmatprep.subr.mxu0 0.0
    %1282 = vmatpush2.msra.mxu0 0.0
    %1283 = vmatprep.subr.mxu0 0.0
    %1284 = vmatpush2.msra.mxu0 0.0
    %1285 = vmatprep.subr.mxu0 0.0
    %1286 = vmatpush2.msra.mxu0 0.0
    %1287 = vmatprep.subr.mxu0 0.0
    %1288 = vmatpush2.msra.mxu0 0.0
    %1289 = vmatprep.subr.mxu0 0.0
    %1290 = vmatpush2.msra.mxu0 0.0
    %1291 = vmatprep.mubr.f32.mxu0 0.0
    %1292 = vmatmul.mubr.f32.gmra.mxu0 %v949
    %v1293 = vpop.f32.mrf.mxu0
    %v1294 = vadd.f32 %v931, %v1293
    %v1295 = vpop.f32.mrf.mxu0
    %v1296 = vadd.f32 %v931, %v1295
    %1297 = vmatprep.mubr.f32.mxu0 0.0
    %1298 = vmatmul.mubr.f32.gmra.mxu0 %v952
    %v1299 = vpop.f32.mrf.mxu0
    %v1300 = vadd.f32 %v936, %v1299
    %v1301 = vpop.f32.mrf.mxu0
    %v1302 = vadd.f32 %v936, %v1301
    %1303 = vmatprep.mubr.f32.mxu0 0.0
    %1304 = vmatmul.mubr.f32.gmra.mxu0 %v955
    %v1305 = vpop.f32.mrf.mxu0
    %v1306 = vadd.f32 %v941, %v1305
    %v1307 = vpop.f32.mrf.mxu0
    %v1308 = vadd.f32 %v941, %v1307
    %1309 = vmatprep.mubr.f32.mxu0 0.0
    %1310 = vmatmul.mubr.f32.gmra.mxu0 %v958
    %v1311 = vpop.f32.mrf.mxu0
    %v1312 = vadd.f32 %v946, %v1311
    %v1313 = vpop.f32.mrf.mxu0
    %v1314 = vadd.f32 %v946, %v1313
    %1315 = vdwg.mxu0
    %v1316 = vmax.f32 %v1027, 0.0
    %v1317 = vmax.f32 %v1029, 0.0
    %v1318 = vmax.f32 %v1116, 0.0
    %v1319 = vmax.f32 %v1118, 0.0
    %v1320 = vmax.f32 %v1205, 0.0
    %v1321 = vmax.f32 %v1207, 0.0
    %v1322 = vmax.f32 %v1294, 0.0
    %v1323 = vmax.f32 %v1296, 0.0
    %v1324 = vmax.f32 %v1033, 0.0
    %v1325 = vmax.f32 %v1035, 0.0
    %v1326 = vmax.f32 %v1122, 0.0
    %v1327 = vmax.f32 %v1124, 0.0
    %v1328 = vmax.f32 %v1211, 0.0
    %v1329 = vmax.f32 %v1213, 0.0
    %v1330 = vmax.f32 %v1300, 0.0
    %v1331 = vmax.f32 %v1302, 0.0
    %v1332 = vmax.f32 %v1039, 0.0
    %v1333 = vmax.f32 %v1041, 0.0
    %v1334 = vmax.f32 %v1128, 0.0
    %v1335 = vmax.f32 %v1130, 0.0
    %v1336 = vmax.f32 %v1217, 0.0
    %v1337 = vmax.f32 %v1219, 0.0
    %v1338 = vmax.f32 %v1306, 0.0
    %v1339 = vmax.f32 %v1308, 0.0
    %v1340 = vmax.f32 %v1045, 0.0
    %v1341 = vmax.f32 %v1047, 0.0
    %v1342 = vmax.f32 %v1134, 0.0
    %v1343 = vmax.f32 %v1136, 0.0
    %v1344 = vmax.f32 %v1223, 0.0
    %v1345 = vmax.f32 %v1225, 0.0
    %v1346 = vmax.f32 %v1312, 0.0
    %v1347 = vmax.f32 %v1314, 0.0
    %v1348 = vld [vmem:[%s7] sm:$0xf]
    %v1349 = vld [vmem:[%s8] sm:$0xf]
    %1351 = vset.pattern.permute.xlu0 0
    %1352 = vperm.xlu0 %1351, %v1349
    %v1353 = vpop.permute.xlu0 %1352
    %v1356 = vsel %vm519, %v1348, 0
    %1358 = vmatprep.subr.mxu0 0.0
    %1359 = vmatpush1.msra.mxu0 0.0
    %1360 = vmatprep.subr.mxu0 0.0
    %1361 = vmatpush1.msra.mxu0 0.0
    %1362 = vmatprep.subr.mxu0 0.0
    %1363 = vmatpush1.msra.mxu0 0.0
    %1364 = vmatprep.subr.mxu0 0.0
    %1365 = vmatpush1.msra.mxu0 0.0
    %1366 = vmatprep.subr.mxu0 0.0
    %1367 = vmatpush1.msra.mxu0 0.0
    %1368 = vmatprep.subr.mxu0 0.0
    %1369 = vmatpush1.msra.mxu0 0.0
    %1370 = vmatprep.subr.mxu0 0.0
    %1371 = vmatpush1.msra.mxu0 0.0
    %1372 = vmatprep.subr.mxu0 0.0
    %1373 = vmatpush1.msra.mxu0 0.0
    %1374 = vmatprep.subr.mxu0 0.0
    %1375 = vmatpush1.msra.mxu0 0.0
    %1376 = vmatprep.subr.mxu0 0.0
    %1377 = vmatpush1.msra.mxu0 0.0
    %1378 = vmatprep.subr.mxu0 0.0
    %1379 = vmatpush1.msra.mxu0 0.0
    %1380 = vmatprep.subr.mxu0 0.0
    %1381 = vmatpush1.msra.mxu0 0.0
    %1382 = vmatprep.subr.mxu0 %v1341
    %1383 = vmatpush1.msra.mxu0 %v1340
    %1384 = vmatprep.subr.mxu0 %v1333
    %1385 = vmatpush1.msra.mxu0 %v1332
    %1386 = vmatprep.subr.mxu0 %v1325
    %1387 = vmatpush1.msra.mxu0 %v1324
    %1388 = vmatprep.subr.mxu0 %v1317
    %1389 = vmatpush1.msra.mxu0 %v1316
    %1390 = vmatprep.subr.mxu0 0.0
    %1391 = vmatpush2.msra.mxu0 0.0
    %1392 = vmatprep.subr.mxu0 0.0
    %1393 = vmatpush2.msra.mxu0 0.0
    %1394 = vmatprep.subr.mxu0 0.0
    %1395 = vmatpush2.msra.mxu0 0.0
    %1396 = vmatprep.subr.mxu0 0.0
    %1397 = vmatpush2.msra.mxu0 0.0
    %1398 = vmatprep.subr.mxu0 0.0
    %1399 = vmatpush2.msra.mxu0 0.0
    %1400 = vmatprep.subr.mxu0 0.0
    %1401 = vmatpush2.msra.mxu0 0.0
    %1402 = vmatprep.subr.mxu0 0.0
    %1403 = vmatpush2.msra.mxu0 0.0
    %1404 = vmatprep.subr.mxu0 0.0
    %1405 = vmatpush2.msra.mxu0 0.0
    %1406 = vmatprep.subr.mxu0 0.0
    %1407 = vmatpush2.msra.mxu0 0.0
    %1408 = vmatprep.subr.mxu0 0.0
    %1409 = vmatpush2.msra.mxu0 0.0
    %1410 = vmatprep.subr.mxu0 0.0
    %1411 = vmatpush2.msra.mxu0 0.0
    %1412 = vmatprep.subr.mxu0 0.0
    %1413 = vmatpush2.msra.mxu0 0.0
    %1414 = vmatprep.subr.mxu0 0.0
    %1415 = vmatpush2.msra.mxu0 0.0
    %1416 = vmatprep.subr.mxu0 0.0
    %1417 = vmatpush2.msra.mxu0 0.0
    %1418 = vmatprep.subr.mxu0 0.0
    %1419 = vmatpush2.msra.mxu0 0.0
    %1420 = vmatprep.subr.mxu0 0.0
    %1421 = vmatpush2.msra.mxu0 0.0
    %1422 = vmatprep.mubr.f32.mxu0 0.0
    %1423 = vmatmul.mubr.f32.gmra.mxu0 %v1356
    %v1424 = vpop.f32.mrf.mxu0
    %v1425 = vadd.f32 %v1353, %v1424
    %v1426 = vpop.f32.mrf.mxu0
    %v1427 = vadd.f32 %v1353, %v1426
    %1428 = vdwg.mxu0
    %1429 = vmatprep.subr.mxu0 0.0
    %1430 = vmatpush1.msra.mxu0 0.0
    %1431 = vmatprep.subr.mxu0 0.0
    %1432 = vmatpush1.msra.mxu0 0.0
    %1433 = vmatprep.subr.mxu0 0.0
    %1434 = vmatpush1.msra.mxu0 0.0
    %1435 = vmatprep.subr.mxu0 0.0
    %1436 = vmatpush1.msra.mxu0 0.0
    %1437 = vmatprep.subr.mxu0 0.0
    %1438 = vmatpush1.msra.mxu0 0.0
    %1439 = vmatprep.subr.mxu0 0.0
    %1440 = vmatpush1.msra.mxu0 0.0
    %1441 = vmatprep.subr.mxu0 0.0
    %1442 = vmatpush1.msra.mxu0 0.0
    %1443 = vmatprep.subr.mxu0 0.0
    %1444 = vmatpush1.msra.mxu0 0.0
    %1445 = vmatprep.subr.mxu0 0.0
    %1446 = vmatpush1.msra.mxu0 0.0
    %1447 = vmatprep.subr.mxu0 0.0
    %1448 = vmatpush1.msra.mxu0 0.0
    %1449 = vmatprep.subr.mxu0 0.0
    %1450 = vmatpush1.msra.mxu0 0.0
    %1451 = vmatprep.subr.mxu0 0.0
    %1452 = vmatpush1.msra.mxu0 0.0
    %1453 = vmatprep.subr.mxu0 %v1343
    %1454 = vmatpush1.msra.mxu0 %v1342
    %1455 = vmatprep.subr.mxu0 %v1335
    %1456 = vmatpush1.msra.mxu0 %v1334
    %1457 = vmatprep.subr.mxu0 %v1327
    %1458 = vmatpush1.msra.mxu0 %v1326
    %1459 = vmatprep.subr.mxu0 %v1319
    %1460 = vmatpush1.msra.mxu0 %v1318
    %1461 = vmatprep.subr.mxu0 0.0
    %1462 = vmatpush2.msra.mxu0 0.0
    %1463 = vmatprep.subr.mxu0 0.0
    %1464 = vmatpush2.msra.mxu0 0.0
    %1465 = vmatprep.subr.mxu0 0.0
    %1466 = vmatpush2.msra.mxu0 0.0
    %1467 = vmatprep.subr.mxu0 0.0
    %1468 = vmatpush2.msra.mxu0 0.0
    %1469 = vmatprep.subr.mxu0 0.0
    %1470 = vmatpush2.msra.mxu0 0.0
    %1471 = vmatprep.subr.mxu0 0.0
    %1472 = vmatpush2.msra.mxu0 0.0
    %1473 = vmatprep.subr.mxu0 0.0
    %1474 = vmatpush2.msra.mxu0 0.0
    %1475 = vmatprep.subr.mxu0 0.0
    %1476 = vmatpush2.msra.mxu0 0.0
    %1477 = vmatprep.subr.mxu0 0.0
    %1478 = vmatpush2.msra.mxu0 0.0
    %1479 = vmatprep.subr.mxu0 0.0
    %1480 = vmatpush2.msra.mxu0 0.0
    %1481 = vmatprep.subr.mxu0 0.0
    %1482 = vmatpush2.msra.mxu0 0.0
    %1483 = vmatprep.subr.mxu0 0.0
    %1484 = vmatpush2.msra.mxu0 0.0
    %1485 = vmatprep.subr.mxu0 0.0
    %1486 = vmatpush2.msra.mxu0 0.0
    %1487 = vmatprep.subr.mxu0 0.0
    %1488 = vmatpush2.msra.mxu0 0.0
    %1489 = vmatprep.subr.mxu0 0.0
    %1490 = vmatpush2.msra.mxu0 0.0
    %1491 = vmatprep.subr.mxu0 0.0
    %1492 = vmatpush2.msra.mxu0 0.0
    %1493 = vmatprep.mubr.f32.mxu0 0.0
    %1494 = vmatmul.mubr.f32.gmra.mxu0 %v1356
    %v1495 = vpop.f32.mrf.mxu0
    %v1496 = vadd.f32 %v1353, %v1495
    %v1497 = vpop.f32.mrf.mxu0
    %v1498 = vadd.f32 %v1353, %v1497
    %1499 = vdwg.mxu0
    %1500 = vmatprep.subr.mxu0 0.0
    %1501 = vmatpush1.msra.mxu0 0.0
    %1502 = vmatprep.subr.mxu0 0.0
    %1503 = vmatpush1.msra.mxu0 0.0
    %1504 = vmatprep.subr.mxu0 0.0
    %1505 = vmatpush1.msra.mxu0 0.0
    %1506 = vmatprep.subr.mxu0 0.0
    %1507 = vmatpush1.msra.mxu0 0.0
    %1508 = vmatprep.subr.mxu0 0.0
    %1509 = vmatpush1.msra.mxu0 0.0
    %1510 = vmatprep.subr.mxu0 0.0
    %1511 = vmatpush1.msra.mxu0 0.0
    %1512 = vmatprep.subr.mxu0 0.0
    %1513 = vmatpush1.msra.mxu0 0.0
    %1514 = vmatprep.subr.mxu0 0.0
    %1515 = vmatpush1.msra.mxu0 0.0
    %1516 = vmatprep.subr.mxu0 0.0
    %1517 = vmatpush1.msra.mxu0 0.0
    %1518 = vmatprep.subr.mxu0 0.0
    %1519 = vmatpush1.msra.mxu0 0.0
    %1520 = vmatprep.subr.mxu0 0.0
    %1521 = vmatpush1.msra.mxu0 0.0
    %1522 = vmatprep.subr.mxu0 0.0
    %1523 = vmatpush1.msra.mxu0 0.0
    %1524 = vmatprep.subr.mxu0 %v1345
    %1525 = vmatpush1.msra.mxu0 %v1344
    %1526 = vmatprep.subr.mxu0 %v1337
    %1527 = vmatpush1.msra.mxu0 %v1336
    %1528 = vmatprep.subr.mxu0 %v1329
    %1529 = vmatpush1.msra.mxu0 %v1328
    %1530 = vmatprep.subr.mxu0 %v1321
    %1531 = vmatpush1.msra.mxu0 %v1320
    %1532 = vmatprep.subr.mxu0 0.0
    %1533 = vmatpush2.msra.mxu0 0.0
    %1534 = vmatprep.subr.mxu0 0.0
    %1535 = vmatpush2.msra.mxu0 0.0
    %1536 = vmatprep.subr.mxu0 0.0
    %1537 = vmatpush2.msra.mxu0 0.0
    %1538 = vmatprep.subr.mxu0 0.0
    %1539 = vmatpush2.msra.mxu0 0.0
    %1540 = vmatprep.subr.mxu0 0.0
    %1541 = vmatpush2.msra.mxu0 0.0
    %1542 = vmatprep.subr.mxu0 0.0
    %1543 = vmatpush2.msra.mxu0 0.0
    %1544 = vmatprep.subr.mxu0 0.0
    %1545 = vmatpush2.msra.mxu0 0.0
    %1546 = vmatprep.subr.mxu0 0.0
    %1547 = vmatpush2.msra.mxu0 0.0
    %1548 = vmatprep.subr.mxu0 0.0
    %1549 = vmatpush2.msra.mxu0 0.0
    %1550 = vmatprep.subr.mxu0 0.0
    %1551 = vmatpush2.msra.mxu0 0.0
    %1552 = vmatprep.subr.mxu0 0.0
    %1553 = vmatpush2.msra.mxu0 0.0
    %1554 = vmatprep.subr.mxu0 0.0
    %1555 = vmatpush2.msra.mxu0 0.0
    %1556 = vmatprep.subr.mxu0 0.0
    %1557 = vmatpush2.msra.mxu0 0.0
    %1558 = vmatprep.subr.mxu0 0.0
    %1559 = vmatpush2.msra.mxu0 0.0
    %1560 = vmatprep.subr.mxu0 0.0
    %1561 = vmatpush2.msra.mxu0 0.0
    %1562 = vmatprep.subr.mxu0 0.0
    %1563 = vmatpush2.msra.mxu0 0.0
    %1564 = vmatprep.mubr.f32.mxu0 0.0
    %1565 = vmatmul.mubr.f32.gmra.mxu0 %v1356
    %v1566 = vpop.f32.mrf.mxu0
    %v1567 = vadd.f32 %v1353, %v1566
    %v1568 = vpop.f32.mrf.mxu0
    %v1569 = vadd.f32 %v1353, %v1568
    %1570 = vdwg.mxu0
    %1571 = vmatprep.subr.mxu0 0.0
    %1572 = vmatpush1.msra.mxu0 0.0
    %1573 = vmatprep.subr.mxu0 0.0
    %1574 = vmatpush1.msra.mxu0 0.0
    %1575 = vmatprep.subr.mxu0 0.0
    %1576 = vmatpush1.msra.mxu0 0.0
    %1577 = vmatprep.subr.mxu0 0.0
    %1578 = vmatpush1.msra.mxu0 0.0
    %1579 = vmatprep.subr.mxu0 0.0
    %1580 = vmatpush1.msra.mxu0 0.0
    %1581 = vmatprep.subr.mxu0 0.0
    %1582 = vmatpush1.msra.mxu0 0.0
    %1583 = vmatprep.subr.mxu0 0.0
    %1584 = vmatpush1.msra.mxu0 0.0
    %1585 = vmatprep.subr.mxu0 0.0
    %1586 = vmatpush1.msra.mxu0 0.0
    %1587 = vmatprep.subr.mxu0 0.0
    %1588 = vmatpush1.msra.mxu0 0.0
    %1589 = vmatprep.subr.mxu0 0.0
    %1590 = vmatpush1.msra.mxu0 0.0
    %1591 = vmatprep.subr.mxu0 0.0
    %1592 = vmatpush1.msra.mxu0 0.0
    %1593 = vmatprep.subr.mxu0 0.0
    %1594 = vmatpush1.msra.mxu0 0.0
    %1595 = vmatprep.subr.mxu0 %v1347
    %1596 = vmatpush1.msra.mxu0 %v1346
    %1597 = vmatprep.subr.mxu0 %v1339
    %1598 = vmatpush1.msra.mxu0 %v1338
    %1599 = vmatprep.subr.mxu0 %v1331
    %1600 = vmatpush1.msra.mxu0 %v1330
    %1601 = vmatprep.subr.mxu0 %v1323
    %1602 = vmatpush1.msra.mxu0 %v1322
    %1603 = vmatprep.subr.mxu0 0.0
    %1604 = vmatpush2.msra.mxu0 0.0
    %1605 = vmatprep.subr.mxu0 0.0
    %1606 = vmatpush2.msra.mxu0 0.0
    %1607 = vmatprep.subr.mxu0 0.0
    %1608 = vmatpush2.msra.mxu0 0.0
    %1609 = vmatprep.subr.mxu0 0.0
    %1610 = vmatpush2.msra.mxu0 0.0
    %1611 = vmatprep.subr.mxu0 0.0
    %1612 = vmatpush2.msra.mxu0 0.0
    %1613 = vmatprep.subr.mxu0 0.0
    %1614 = vmatpush2.msra.mxu0 0.0
    %1615 = vmatprep.subr.mxu0 0.0
    %1616 = vmatpush2.msra.mxu0 0.0
    %1617 = vmatprep.subr.mxu0 0.0
    %1618 = vmatpush2.msra.mxu0 0.0
    %1619 = vmatprep.subr.mxu0 0.0
    %1620 = vmatpush2.msra.mxu0 0.0
    %1621 = vmatprep.subr.mxu0 0.0
    %1622 = vmatpush2.msra.mxu0 0.0
    %1623 = vmatprep.subr.mxu0 0.0
    %1624 = vmatpush2.msra.mxu0 0.0
    %1625 = vmatprep.subr.mxu0 0.0
    %1626 = vmatpush2.msra.mxu0 0.0
    %1627 = vmatprep.subr.mxu0 0.0
    %1628 = vmatpush2.msra.mxu0 0.0
    %1629 = vmatprep.subr.mxu0 0.0
    %1630 = vmatpush2.msra.mxu0 0.0
    %1631 = vmatprep.subr.mxu0 0.0
    %1632 = vmatpush2.msra.mxu0 0.0
    %1633 = vmatprep.subr.mxu0 0.0
    %1634 = vmatpush2.msra.mxu0 0.0
    %1635 = vmatprep.mubr.f32.mxu0 0.0
    %1636 = vmatmul.mubr.f32.gmra.mxu0 %v1356
    %v1637 = vpop.f32.mrf.mxu0
    %v1638 = vadd.f32 %v1353, %v1637
    %v1639 = vpop.f32.mrf.mxu0
    %v1640 = vadd.f32 %v1353, %v1639
    %1641 = vdwg.mxu0
    %v1642 = vmax.f32 %v1425, 0.0
    %v1643 = vmax.f32 %v1427, 0.0
    %v1644 = vmax.f32 %v1496, 0.0
    %v1645 = vmax.f32 %v1498, 0.0
    %v1646 = vmax.f32 %v1567, 0.0
    %v1647 = vmax.f32 %v1569, 0.0
    %v1648 = vmax.f32 %v1638, 0.0
    %v1649 = vmax.f32 %v1640, 0.0
    %v1658 = vcombine.low %v1642, %v1643
    %v1659 = vcombine.low %v1644, %v1645
    %v1660 = vcombine.low %v1646, %v1647
    %v1661 = vcombine.low %v1648, %v1649
    %1666 = vst [vmem:[#allocation2] sm:$0xff] %v1658
    %1667 = vst [vmem:[#allocation2 + $0x8] sm:$0xff] %v1659
    %1668 = vst [vmem:[#allocation2 + $0x10] sm:$0xff] %v1660
    %1669 = vst [vmem:[#allocation2 + $0x18] sm:$0xff] %v1661
    // Predicated region
    $region38: #{tpu_custom_call.1} parent=1 // pred_check
      _
    $region39: #{tpu_custom_call.1} parent=1 // pred_check_branch
      %1671 = sbr.rel (0) target = $region41
    $region40: #{tpu_custom_call.1} parent=1 // pred_region
      %s1673 = ssub.s32 512, 512
      %1674 = vsyncadd [#allocation3], %s1673
      %s1676 = sshll.u32 [#allocation2], 4
      %s1677 = int_to_ptr.vmem [resolvable:$true] %s1676
      %1679 = dma.vmem_to_hbm [thread:$0]  %s1677, 512, %s9, [#allocation3]
    $region41: #{tpu_custom_call.1} parent=1 // pred_fallthru
      _
    // Predicated region
    $region42: #{tpu_custom_call.1} parent=1 // pred_check
      _
    $region43: #{tpu_custom_call.1} parent=1 // pred_check_branch
      %1681 = sbr.rel (0) target = $region45
    $region44: #{tpu_custom_call.1} parent=1 // pred_region
      %1682 = dma.done [#allocation3], 512
    $region45: #{tpu_custom_call.1} parent=1 // pred_fallthru
      _
    %1683 = vsyncpa [#allocation3], 1

</llo_original>
